<compile_context>
chip_gen: v6e
topology: v6e:2x2x1
jax: 0.10.0
libtpu: 0.0.40
codegen_flags: <defaults>
</compile_context>

<pallas_src>
import math
from functools import partial

import jax
import jax.numpy as jnp
from jax import lax
from jax.experimental import pallas as pl
from jax.experimental.pallas import tpu as pltpu


def _gmha_kernel(*refs, n_head, d_k, d_v, inv_temperature, has_graph_pos,
                 has_mask, ln_eps):
    """One grid step = one batch element.

    Input refs (in order):
      xq, xk, xv          : (1, L, D)  float32  (batch-major)
      wq, wk, wv, wfc     : (D, D)     float32  (pre-transposed: y = x @ W)
      gamma, beta         : (1, D)     float32
      [graph_pos]         : (H, L, L)  float32  (pre-permuted (2,1,0))
      [mask]              : (1, L, L)  float32  (0 = masked)
    Output refs:
      out                 : (1, L, D)  float32
      attn                : (1, H, L, L) float32 (post-softmax probabilities)
    """
    xq_ref, xk_ref, xv_ref = refs[0], refs[1], refs[2]
    wq_ref, wk_ref, wv_ref, wfc_ref = refs[3], refs[4], refs[5], refs[6]
    gamma_ref, beta_ref = refs[7], refs[8]
    i = 9
    gp_ref = None
    mask_ref = None
    if has_graph_pos:
        gp_ref = refs[i]
        i += 1
    if has_mask:
        mask_ref = refs[i]
        i += 1
    out_ref, attn_ref = refs[i], refs[i + 1]

    xq = xq_ref[0]                                   # (L, D)
    xk = xk_ref[0]
    xv = xv_ref[0]

    # QKV projections on the MXU.  Temperature folded into a single multiply
    # of the full Q projection (linear, so equivalent to scaling per head).
    q_proj = jnp.dot(xq, wq_ref[...],
                     preferred_element_type=jnp.float32) * inv_temperature
    k_proj = jnp.dot(xk, wk_ref[...], preferred_element_type=jnp.float32)
    v_proj = jnp.dot(xv, wv_ref[...], preferred_element_type=jnp.float32)

    if has_mask:
        masked = mask_ref[0] == 0.0                  # (L, L) bool, once/step

    # Per-head attention; n_head is a small static constant so unroll.
    attn_heads = []
    o_cols = []
    for h in range(n_head):
        qh = q_proj[:, h * d_k:(h + 1) * d_k]        # (L, d_k), already scaled
        kh = k_proj[:, h * d_k:(h + 1) * d_k]        # (L, d_k)
        vh = v_proj[:, h * d_v:(h + 1) * d_v]        # (L, d_v)

        scores = jnp.dot(qh, kh.T, preferred_element_type=jnp.float32)  # (L,L)
        if has_mask:
            scores = jnp.where(masked, jnp.float32(-1e9), scores)

        # softmax over keys (dropout = identity in eval mode)
        smax = jnp.max(scores, axis=-1, keepdims=True)
        p = jnp.exp(scores - smax)
        attno = p / jnp.sum(p, axis=-1, keepdims=True)                  # (L,L)
        attn_heads.append(attno)

        if has_graph_pos:
            attn_used = attno * gp_ref[h]            # (L, L)
        else:
            # Faithful to the reference module: when graph_pos is None the
            # (masked) pre-softmax scores are used for the value matmul.
            attn_used = scores

        o_cols.append(jnp.dot(attn_used, vh,
                              preferred_element_type=jnp.float32))      # (L,d_v)

    # Single store of all heads' probabilities.
    attn_ref[0] = jnp.stack(attn_heads, axis=0)      # (H, L, L)

    o_cat = jnp.concatenate(o_cols, axis=-1)         # (L, n_head*d_v) = (L, D)

    # Output projection + residual + LayerNorm (eps=1e-6), all fused.
    out = jnp.dot(o_cat, wfc_ref[...], preferred_element_type=jnp.float32)
    out = out + xq                                   # residual (pre-projection q)

    mean = jnp.mean(out, axis=-1, keepdims=True)
    cent = out - mean
    var = jnp.mean(cent * cent, axis=-1, keepdims=True)
    y = cent * lax.rsqrt(var + jnp.float32(ln_eps))
    y = y * gamma_ref[...] + beta_ref[...]

    out_ref[0] = y


def graph_multihead_attention(q, k, v, w_qs, w_ks, w_vs, w_fc, ln_gamma,
                              ln_beta, n_head, graph_pos=None, mask=None,
                              ln_eps=1e-6):
    """Pallas equivalent of GraphMultiheadAttention.forward.

    q, k, v    : (L, B, D)   (seq-major, same as the PyTorch module)
    w_*        : (D, D)      PyTorch Linear weights (out, in), no bias
    ln_gamma   : (D,)        LayerNorm weight
    ln_beta    : (D,)        LayerNorm bias
    graph_pos  : (L_k, L_q, n_head) or None
    mask       : (B, L_q, L_k) (nonzero = keep) or None
    Returns (q_out (L, B, D), attn (B, n_head, L_q, L_k)).
    """
    L, B, D = q.shape
    assert D % n_head == 0
    d_k = D // n_head
    d_v = D // n_head
    inv_temperature = 1.0 / math.sqrt(float(d_k))

    # Batch-major activations; weights pre-transposed so kernel does x @ W.
    xq = jnp.transpose(q, (1, 0, 2)).astype(jnp.float32)          # (B, L, D)
    xk = jnp.transpose(k, (1, 0, 2)).astype(jnp.float32)
    xv = jnp.transpose(v, (1, 0, 2)).astype(jnp.float32)
    wq_t = jnp.transpose(w_qs).astype(jnp.float32)                # (D, D)
    wk_t = jnp.transpose(w_ks).astype(jnp.float32)
    wv_t = jnp.transpose(w_vs).astype(jnp.float32)
    wfc_t = jnp.transpose(w_fc).astype(jnp.float32)
    gamma2 = ln_gamma.reshape(1, D).astype(jnp.float32)
    beta2 = ln_beta.reshape(1, D).astype(jnp.float32)

    inputs = [xq, xk, xv, wq_t, wk_t, wv_t, wfc_t, gamma2, beta2]
    in_specs = [
        pl.BlockSpec((1, L, D), lambda b: (b, 0, 0)),
        pl.BlockSpec((1, L, D), lambda b: (b, 0, 0)),
        pl.BlockSpec((1, L, D), lambda b: (b, 0, 0)),
        pl.BlockSpec((D, D), lambda b: (0, 0)),
        pl.BlockSpec((D, D), lambda b: (0, 0)),
        pl.BlockSpec((D, D), lambda b: (0, 0)),
        pl.BlockSpec((D, D), lambda b: (0, 0)),
        pl.BlockSpec((1, D), lambda b: (0, 0)),
        pl.BlockSpec((1, D), lambda b: (0, 0)),
    ]

    has_gp = graph_pos is not None
    has_mask = mask is not None
    if has_gp:
        gp = jnp.transpose(graph_pos, (2, 1, 0)).astype(jnp.float32)  # (H,Lq,Lk)
        inputs.append(gp)
        in_specs.append(pl.BlockSpec((n_head, L, L), lambda b: (0, 0, 0)))
    if has_mask:
        m = mask.astype(jnp.float32)                                  # (B, L, L)
        inputs.append(m)
        in_specs.append(pl.BlockSpec((1, L, L), lambda b: (b, 0, 0)))

    kernel = partial(_gmha_kernel, n_head=n_head, d_k=d_k, d_v=d_v,
                     inv_temperature=inv_temperature, has_graph_pos=has_gp,
                     has_mask=has_mask, ln_eps=ln_eps)

    out_bld, attn = pl.pallas_call(
        kernel,
        out_shape=(jax.ShapeDtypeStruct((B, L, D), jnp.float32),
                   jax.ShapeDtypeStruct((B, n_head, L, L), jnp.float32)),
        grid_spec=pltpu.PrefetchScalarGridSpec(
            num_scalar_prefetch=0,
            grid=(B,),
            in_specs=in_specs,
            out_specs=(pl.BlockSpec((1, L, D), lambda b: (b, 0, 0)),
                       pl.BlockSpec((1, n_head, L, L),
                                    lambda b: (b, 0, 0, 0))),
        ),
        compiler_params=pltpu.CompilerParams(
            dimension_semantics=("parallel",)),
    )(*inputs)

    # matches the final `q.permute(1, 0, 2)` in the PyTorch module
    q_out = jnp.transpose(out_bld, (1, 0, 2))                     # (L, B, D)
    return q_out, attn


def _reference(q, k, v, w_qs, w_ks, w_vs, w_fc, ln_gamma, ln_beta, n_head,
               graph_pos=None, mask=None, ln_eps=1e-6):
    """Pure-JAX transcription of the PyTorch forward (dropout = identity)."""
    L, B, D = q.shape
    d_k = D // n_head
    temperature = math.sqrt(float(d_k))

    xq = jnp.transpose(q, (1, 0, 2))
    xk = jnp.transpose(k, (1, 0, 2))
    xv = jnp.transpose(v, (1, 0, 2))
    residual = xq

    Q = xq @ w_qs.T
    K = xk @ w_ks.T
    V = xv @ w_vs.T
    Q = Q.reshape(B, L, n_head, d_k).transpose(0, 2, 1, 3)
    K = K.reshape(B, L, n_head, d_k).transpose(0, 2, 1, 3)
    V = V.reshape(B, L, n_head, d_k).transpose(0, 2, 1, 3)

    attn = jnp.einsum('bhqd,bhkd->bhqk', Q / temperature, K)
    if mask is not None:
        attn = jnp.where(mask[:, None, :, :] == 0, -1e9, attn)
    attno = jax.nn.softmax(attn, axis=-1)
    if graph_pos is not None:
        attn_used = attno * jnp.transpose(graph_pos, (2, 1, 0))[None]
    else:
        attn_used = attn
    out = jnp.einsum('bhqk,bhkd->bhqd', attn_used, V)
    out = out.transpose(0, 2, 1, 3).reshape(B, L, D)
    out = out @ w_fc.T
    out = out + residual

    mean = jnp.mean(out, axis=-1, keepdims=True)
    var = jnp.mean((out - mean) ** 2, axis=-1, keepdims=True)
    y = (out - mean) / jnp.sqrt(var + ln_eps) * ln_gamma + ln_beta
    return jnp.transpose(y, (1, 0, 2)), attno


if __name__ == "__main__":
    key = jax.random.PRNGKey(0)
    ks = jax.random.split(key, 10)

    L, B, D, H = 8, 2, 32, 4          # seq=8, batch=2, d_model=32, n_head=4

    q = jax.random.normal(ks[0], (L, B, D), dtype=jnp.float32)
    k = jax.random.normal(ks[1], (L, B, D), dtype=jnp.float32)
    v = jax.random.normal(ks[2], (L, B, D), dtype=jnp.float32)

    w_qs = jax.random.normal(ks[3], (D, D), dtype=jnp.float32) / math.sqrt(D)
    w_ks = jax.random.normal(ks[4], (D, D), dtype=jnp.float32) / math.sqrt(D)
    w_vs = jax.random.normal(ks[5], (D, D), dtype=jnp.float32) / math.sqrt(D)
    w_fc = jax.random.normal(ks[6], (D, D), dtype=jnp.float32) / math.sqrt(D)
    ln_gamma = 1.0 + 0.1 * jax.random.normal(ks[7], (D,), dtype=jnp.float32)
    ln_beta = 0.1 * jax.random.normal(ks[8], (D,), dtype=jnp.float32)

    graph_pos = jax.random.uniform(ks[9], (L, L, H), dtype=jnp.float32)
    mask = (jax.random.uniform(jax.random.PRNGKey(1), (B, L, L)) > 0.2)
    mask = jnp.maximum(mask.astype(jnp.float32), jnp.eye(L)[None])  # keep diag

    out, attn = graph_multihead_attention(
        q, k, v, w_qs, w_ks, w_vs, w_fc, ln_gamma, ln_beta, H,
        graph_pos=graph_pos, mask=mask)
    out = jax.block_until_ready(out)
    attn = jax.block_until_ready(attn)

    ref_out, ref_attn = _reference(
        q, k, v, w_qs, w_ks, w_vs, w_fc, ln_gamma, ln_beta, H,
        graph_pos=graph_pos, mask=mask)

    assert out.shape == (L, B, D)
    assert attn.shape == (B, H, L, L)
    assert out.dtype == jnp.float32
    assert jnp.allclose(out, ref_out, atol=2e-4, rtol=2e-4)
    assert jnp.allclose(attn, ref_attn, atol=2e-4, rtol=2e-4)

    # Also exercise the graph_pos=None / mask=None path (uses pre-softmax
    # scores for the value matmul, exactly like the PyTorch module).
    out2, attn2 = graph_multihead_attention(
        q, k, v, w_qs, w_ks, w_vs, w_fc, ln_gamma, ln_beta, H)
    out2 = jax.block_until_ready(out2)
    ref_out2, ref_attn2 = _reference(
        q, k, v, w_qs, w_ks, w_vs, w_fc, ln_gamma, ln_beta, H)
    assert jnp.allclose(out2, ref_out2, atol=2e-4, rtol=2e-4)
    assert jnp.allclose(attn2, ref_attn2, atol=2e-4, rtol=2e-4)

    print("KERNEL_OK")
</pallas_src>

<mosaic_0001>
module attributes {stable_mosaic.version = 11 : i64} {
  func.func @_gmha_kernel(%arg0: i32, %arg1: memref<1x8x32xf32, #tpu.memory_space<vmem>>, %arg2: memref<1x8x32xf32, #tpu.memory_space<vmem>>, %arg3: memref<1x8x32xf32, #tpu.memory_space<vmem>>, %arg4: memref<32x32xf32, #tpu.memory_space<vmem>>, %arg5: memref<32x32xf32, #tpu.memory_space<vmem>>, %arg6: memref<32x32xf32, #tpu.memory_space<vmem>>, %arg7: memref<32x32xf32, #tpu.memory_space<vmem>>, %arg8: memref<1x32xf32, #tpu.memory_space<vmem>>, %arg9: memref<1x32xf32, #tpu.memory_space<vmem>>, %arg10: memref<4x8x8xf32, #tpu.memory_space<vmem>>, %arg11: memref<1x8x8xf32, #tpu.memory_space<vmem>>, %arg12: memref<1x8x32xf32, #tpu.memory_space<vmem>>, %arg13: memref<1x4x8x8xf32, #tpu.memory_space<vmem>>) attributes {dimension_semantics = [#tpu.dimension_semantics<parallel>], iteration_bounds = array<i64: 2>, scalar_prefetch = 0 : i64, scratch_operands = 0 : i64, tpu.core_type = #tpu.core_type<tc>, window_params = [{transform_indices = @transform_0, window_bounds = array<i64: 1, 8, 32>}, {transform_indices = @transform_1, window_bounds = array<i64: 1, 8, 32>}, {transform_indices = @transform_2, window_bounds = array<i64: 1, 8, 32>}, {pipeline_mode = #tpu.pipeline_mode<synchronous>, transform_indices = @transform_3, window_bounds = array<i64: 32, 32>}, {pipeline_mode = #tpu.pipeline_mode<synchronous>, transform_indices = @transform_4, window_bounds = array<i64: 32, 32>}, {pipeline_mode = #tpu.pipeline_mode<synchronous>, transform_indices = @transform_5, window_bounds = array<i64: 32, 32>}, {pipeline_mode = #tpu.pipeline_mode<synchronous>, transform_indices = @transform_6, window_bounds = array<i64: 32, 32>}, {pipeline_mode = #tpu.pipeline_mode<synchronous>, transform_indices = @transform_7, window_bounds = array<i64: 1, 32>}, {pipeline_mode = #tpu.pipeline_mode<synchronous>, transform_indices = @transform_8, window_bounds = array<i64: 1, 32>}, {pipeline_mode = #tpu.pipeline_mode<synchronous>, transform_indices = @transform_9, window_bounds = array<i64: 4, 8, 8>}, {transform_indices = @transform_10, window_bounds = array<i64: 1, 8, 8>}, {transform_indices = @transform_11, window_bounds = array<i64: 1, 8, 32>}, {transform_indices = @transform_12, window_bounds = array<i64: 1, 4, 8, 8>}]} {
    %c0 = arith.constant 0 : index
    %c0_0 = arith.constant 0 : index
    %c0_1 = arith.constant 0 : index
    %0 = vector.load %arg1[%c0, %c0_0, %c0_1] : memref<1x8x32xf32, #tpu.memory_space<vmem>>, vector<1x8x32xf32>
    %1 = vector.shape_cast %0 : vector<1x8x32xf32> to vector<8x32xf32>
    %c0_2 = arith.constant 0 : index
    %c0_3 = arith.constant 0 : index
    %c0_4 = arith.constant 0 : index
    %2 = vector.load %arg2[%c0_2, %c0_3, %c0_4] : memref<1x8x32xf32, #tpu.memory_space<vmem>>, vector<1x8x32xf32>
    %3 = vector.shape_cast %2 : vector<1x8x32xf32> to vector<8x32xf32>
    %c0_5 = arith.constant 0 : index
    %c0_6 = arith.constant 0 : index
    %c0_7 = arith.constant 0 : index
    %4 = vector.load %arg3[%c0_5, %c0_6, %c0_7] : memref<1x8x32xf32, #tpu.memory_space<vmem>>, vector<1x8x32xf32>
    %5 = vector.shape_cast %4 : vector<1x8x32xf32> to vector<8x32xf32>
    %c0_8 = arith.constant 0 : index
    %c0_9 = arith.constant 0 : index
    %6 = vector.load %arg4[%c0_8, %c0_9] : memref<32x32xf32, #tpu.memory_space<vmem>>, vector<32x32xf32>
    %cst = arith.constant dense<0.000000e+00> : vector<8x32xf32>
    %7 = tpu.matmul %1, %6, %cst {dimension_numbers = #tpu.dot_dimension_numbers<[1], [0], [0], [1], [0, 0, 1, 1], [], []>} : vector<8x32xf32>, vector<32x32xf32>, vector<8x32xf32> -> vector<8x32xf32>
    %cst_10 = arith.constant 0.353553385 : f32
    %8 = vector.broadcast %cst_10 : f32 to vector<8x32xf32>
    %9 = arith.mulf %7, %8 : vector<8x32xf32>
    %c0_11 = arith.constant 0 : index
    %c0_12 = arith.constant 0 : index
    %10 = vector.load %arg5[%c0_11, %c0_12] : memref<32x32xf32, #tpu.memory_space<vmem>>, vector<32x32xf32>
    %cst_13 = arith.constant dense<0.000000e+00> : vector<8x32xf32>
    %11 = tpu.matmul %3, %10, %cst_13 {dimension_numbers = #tpu.dot_dimension_numbers<[1], [0], [0], [1], [0, 0, 1, 1], [], []>} : vector<8x32xf32>, vector<32x32xf32>, vector<8x32xf32> -> vector<8x32xf32>
    %c0_14 = arith.constant 0 : index
    %c0_15 = arith.constant 0 : index
    %12 = vector.load %arg6[%c0_14, %c0_15] : memref<32x32xf32, #tpu.memory_space<vmem>>, vector<32x32xf32>
    %cst_16 = arith.constant dense<0.000000e+00> : vector<8x32xf32>
    %13 = tpu.matmul %5, %12, %cst_16 {dimension_numbers = #tpu.dot_dimension_numbers<[1], [0], [0], [1], [0, 0, 1, 1], [], []>} : vector<8x32xf32>, vector<32x32xf32>, vector<8x32xf32> -> vector<8x32xf32>
    %c0_17 = arith.constant 0 : index
    %c0_18 = arith.constant 0 : index
    %c0_19 = arith.constant 0 : index
    %14 = vector.load %arg11[%c0_17, %c0_18, %c0_19] : memref<1x8x8xf32, #tpu.memory_space<vmem>>, vector<1x8x8xf32>
    %15 = vector.shape_cast %14 : vector<1x8x8xf32> to vector<8x8xf32>
    %cst_20 = arith.constant 0.000000e+00 : f32
    %16 = vector.broadcast %cst_20 : f32 to vector<8x8xf32>
    %17 = arith.cmpf oeq, %15, %16 : vector<8x8xf32>
    %18 = vector.extract_strided_slice %9 {offsets = [0, 0], sizes = [8, 8], strides = [1, 1]} : vector<8x32xf32> to vector<8x8xf32>
    %19 = vector.extract_strided_slice %11 {offsets = [0, 0], sizes = [8, 8], strides = [1, 1]} : vector<8x32xf32> to vector<8x8xf32>
    %20 = vector.extract_strided_slice %13 {offsets = [0, 0], sizes = [8, 8], strides = [1, 1]} : vector<8x32xf32> to vector<8x8xf32>
    %21 = tpu.transpose %19, [1, 0] : vector<8x8xf32> -> vector<8x8xf32>
    %cst_21 = arith.constant dense<0.000000e+00> : vector<8x8xf32>
    %22 = tpu.matmul %18, %21, %cst_21 {dimension_numbers = #tpu.dot_dimension_numbers<[1], [0], [0], [1], [0, 0, 1, 1], [], []>} : vector<8x8xf32>, vector<8x8xf32>, vector<8x8xf32> -> vector<8x8xf32>
    %cst_22 = arith.constant -1.000000e+09 : f32
    %23 = vector.broadcast %cst_22 : f32 to vector<8x8xf32>
    %24 = arith.select %17, %23, %22 : vector<8x8xi1>, vector<8x8xf32>
    %cst_23 = arith.constant dense<0xFF800000> : vector<8xf32>
    %25 = vector.multi_reduction <maximumf>, %24, %cst_23 [1] : vector<8x8xf32> to vector<8xf32>
    %26 = vector.shape_cast %25 : vector<8xf32> to vector<8x1xf32>
    %27 = vector.broadcast %26 : vector<8x1xf32> to vector<8x8xf32>
    %28 = arith.subf %24, %27 : vector<8x8xf32>
    %29 = math.exp %28 : vector<8x8xf32>
    %cst_24 = arith.constant dense<0.000000e+00> : vector<8xf32>
    %30 = vector.multi_reduction <add>, %29, %cst_24 [1] : vector<8x8xf32> to vector<8xf32>
    %31 = vector.shape_cast %30 : vector<8xf32> to vector<8x1xf32>
    %32 = vector.broadcast %31 : vector<8x1xf32> to vector<8x8xf32>
    %33 = arith.divf %29, %32 : vector<8x8xf32>
    %c0_25 = arith.constant 0 : index
    %c0_26 = arith.constant 0 : index
    %c0_27 = arith.constant 0 : index
    %34 = vector.load %arg10[%c0_25, %c0_26, %c0_27] : memref<4x8x8xf32, #tpu.memory_space<vmem>>, vector<1x8x8xf32>
    %35 = vector.shape_cast %34 : vector<1x8x8xf32> to vector<8x8xf32>
    %36 = arith.mulf %33, %35 : vector<8x8xf32>
    %cst_28 = arith.constant dense<0.000000e+00> : vector<8x8xf32>
    %37 = tpu.matmul %36, %20, %cst_28 {dimension_numbers = #tpu.dot_dimension_numbers<[1], [0], [0], [1], [0, 0, 1, 1], [], []>} : vector<8x8xf32>, vector<8x8xf32>, vector<8x8xf32> -> vector<8x8xf32>
    %38 = vector.extract_strided_slice %9 {offsets = [0, 8], sizes = [8, 8], strides = [1, 1]} : vector<8x32xf32> to vector<8x8xf32>
    %39 = vector.extract_strided_slice %11 {offsets = [0, 8], sizes = [8, 8], strides = [1, 1]} : vector<8x32xf32> to vector<8x8xf32>
    %40 = vector.extract_strided_slice %13 {offsets = [0, 8], sizes = [8, 8], strides = [1, 1]} : vector<8x32xf32> to vector<8x8xf32>
    %41 = tpu.transpose %39, [1, 0] : vector<8x8xf32> -> vector<8x8xf32>
    %cst_29 = arith.constant dense<0.000000e+00> : vector<8x8xf32>
    %42 = tpu.matmul %38, %41, %cst_29 {dimension_numbers = #tpu.dot_dimension_numbers<[1], [0], [0], [1], [0, 0, 1, 1], [], []>} : vector<8x8xf32>, vector<8x8xf32>, vector<8x8xf32> -> vector<8x8xf32>
    %cst_30 = arith.constant -1.000000e+09 : f32
    %43 = vector.broadcast %cst_30 : f32 to vector<8x8xf32>
    %44 = arith.select %17, %43, %42 : vector<8x8xi1>, vector<8x8xf32>
    %cst_31 = arith.constant dense<0xFF800000> : vector<8xf32>
    %45 = vector.multi_reduction <maximumf>, %44, %cst_31 [1] : vector<8x8xf32> to vector<8xf32>
    %46 = vector.shape_cast %45 : vector<8xf32> to vector<8x1xf32>
    %47 = vector.broadcast %46 : vector<8x1xf32> to vector<8x8xf32>
    %48 = arith.subf %44, %47 : vector<8x8xf32>
    %49 = math.exp %48 : vector<8x8xf32>
    %cst_32 = arith.constant dense<0.000000e+00> : vector<8xf32>
    %50 = vector.multi_reduction <add>, %49, %cst_32 [1] : vector<8x8xf32> to vector<8xf32>
    %51 = vector.shape_cast %50 : vector<8xf32> to vector<8x1xf32>
    %52 = vector.broadcast %51 : vector<8x1xf32> to vector<8x8xf32>
    %53 = arith.divf %49, %52 : vector<8x8xf32>
    %c1 = arith.constant 1 : index
    %c0_33 = arith.constant 0 : index
    %c0_34 = arith.constant 0 : index
    %54 = vector.load %arg10[%c1, %c0_33, %c0_34] : memref<4x8x8xf32, #tpu.memory_space<vmem>>, vector<1x8x8xf32>
    %55 = vector.shape_cast %54 : vector<1x8x8xf32> to vector<8x8xf32>
    %56 = arith.mulf %53, %55 : vector<8x8xf32>
    %cst_35 = arith.constant dense<0.000000e+00> : vector<8x8xf32>
    %57 = tpu.matmul %56, %40, %cst_35 {dimension_numbers = #tpu.dot_dimension_numbers<[1], [0], [0], [1], [0, 0, 1, 1], [], []>} : vector<8x8xf32>, vector<8x8xf32>, vector<8x8xf32> -> vector<8x8xf32>
    %58 = vector.extract_strided_slice %9 {offsets = [0, 16], sizes = [8, 8], strides = [1, 1]} : vector<8x32xf32> to vector<8x8xf32>
    %59 = vector.extract_strided_slice %11 {offsets = [0, 16], sizes = [8, 8], strides = [1, 1]} : vector<8x32xf32> to vector<8x8xf32>
    %60 = vector.extract_strided_slice %13 {offsets = [0, 16], sizes = [8, 8], strides = [1, 1]} : vector<8x32xf32> to vector<8x8xf32>
    %61 = tpu.transpose %59, [1, 0] : vector<8x8xf32> -> vector<8x8xf32>
    %cst_36 = arith.constant dense<0.000000e+00> : vector<8x8xf32>
    %62 = tpu.matmul %58, %61, %cst_36 {dimension_numbers = #tpu.dot_dimension_numbers<[1], [0], [0], [1], [0, 0, 1, 1], [], []>} : vector<8x8xf32>, vector<8x8xf32>, vector<8x8xf32> -> vector<8x8xf32>
    %cst_37 = arith.constant -1.000000e+09 : f32
    %63 = vector.broadcast %cst_37 : f32 to vector<8x8xf32>
    %64 = arith.select %17, %63, %62 : vector<8x8xi1>, vector<8x8xf32>
    %cst_38 = arith.constant dense<0xFF800000> : vector<8xf32>
    %65 = vector.multi_reduction <maximumf>, %64, %cst_38 [1] : vector<8x8xf32> to vector<8xf32>
    %66 = vector.shape_cast %65 : vector<8xf32> to vector<8x1xf32>
    %67 = vector.broadcast %66 : vector<8x1xf32> to vector<8x8xf32>
    %68 = arith.subf %64, %67 : vector<8x8xf32>
    %69 = math.exp %68 : vector<8x8xf32>
    %cst_39 = arith.constant dense<0.000000e+00> : vector<8xf32>
    %70 = vector.multi_reduction <add>, %69, %cst_39 [1] : vector<8x8xf32> to vector<8xf32>
    %71 = vector.shape_cast %70 : vector<8xf32> to vector<8x1xf32>
    %72 = vector.broadcast %71 : vector<8x1xf32> to vector<8x8xf32>
    %73 = arith.divf %69, %72 : vector<8x8xf32>
    %c2 = arith.constant 2 : index
    %c0_40 = arith.constant 0 : index
    %c0_41 = arith.constant 0 : index
    %74 = vector.load %arg10[%c2, %c0_40, %c0_41] : memref<4x8x8xf32, #tpu.memory_space<vmem>>, vector<1x8x8xf32>
    %75 = vector.shape_cast %74 : vector<1x8x8xf32> to vector<8x8xf32>
    %76 = arith.mulf %73, %75 : vector<8x8xf32>
    %cst_42 = arith.constant dense<0.000000e+00> : vector<8x8xf32>
    %77 = tpu.matmul %76, %60, %cst_42 {dimension_numbers = #tpu.dot_dimension_numbers<[1], [0], [0], [1], [0, 0, 1, 1], [], []>} : vector<8x8xf32>, vector<8x8xf32>, vector<8x8xf32> -> vector<8x8xf32>
    %78 = vector.extract_strided_slice %9 {offsets = [0, 24], sizes = [8, 8], strides = [1, 1]} : vector<8x32xf32> to vector<8x8xf32>
    %79 = vector.extract_strided_slice %11 {offsets = [0, 24], sizes = [8, 8], strides = [1, 1]} : vector<8x32xf32> to vector<8x8xf32>
    %80 = vector.extract_strided_slice %13 {offsets = [0, 24], sizes = [8, 8], strides = [1, 1]} : vector<8x32xf32> to vector<8x8xf32>
    %81 = tpu.transpose %79, [1, 0] : vector<8x8xf32> -> vector<8x8xf32>
    %cst_43 = arith.constant dense<0.000000e+00> : vector<8x8xf32>
    %82 = tpu.matmul %78, %81, %cst_43 {dimension_numbers = #tpu.dot_dimension_numbers<[1], [0], [0], [1], [0, 0, 1, 1], [], []>} : vector<8x8xf32>, vector<8x8xf32>, vector<8x8xf32> -> vector<8x8xf32>
    %cst_44 = arith.constant -1.000000e+09 : f32
    %83 = vector.broadcast %cst_44 : f32 to vector<8x8xf32>
    %84 = arith.select %17, %83, %82 : vector<8x8xi1>, vector<8x8xf32>
    %cst_45 = arith.constant dense<0xFF800000> : vector<8xf32>
    %85 = vector.multi_reduction <maximumf>, %84, %cst_45 [1] : vector<8x8xf32> to vector<8xf32>
    %86 = vector.shape_cast %85 : vector<8xf32> to vector<8x1xf32>
    %87 = vector.broadcast %86 : vector<8x1xf32> to vector<8x8xf32>
    %88 = arith.subf %84, %87 : vector<8x8xf32>
    %89 = math.exp %88 : vector<8x8xf32>
    %cst_46 = arith.constant dense<0.000000e+00> : vector<8xf32>
    %90 = vector.multi_reduction <add>, %89, %cst_46 [1] : vector<8x8xf32> to vector<8xf32>
    %91 = vector.shape_cast %90 : vector<8xf32> to vector<8x1xf32>
    %92 = vector.broadcast %91 : vector<8x1xf32> to vector<8x8xf32>
    %93 = arith.divf %89, %92 : vector<8x8xf32>
    %c3 = arith.constant 3 : index
    %c0_47 = arith.constant 0 : index
    %c0_48 = arith.constant 0 : index
    %94 = vector.load %arg10[%c3, %c0_47, %c0_48] : memref<4x8x8xf32, #tpu.memory_space<vmem>>, vector<1x8x8xf32>
    %95 = vector.shape_cast %94 : vector<1x8x8xf32> to vector<8x8xf32>
    %96 = arith.mulf %93, %95 : vector<8x8xf32>
    %cst_49 = arith.constant dense<0.000000e+00> : vector<8x8xf32>
    %97 = tpu.matmul %96, %80, %cst_49 {dimension_numbers = #tpu.dot_dimension_numbers<[1], [0], [0], [1], [0, 0, 1, 1], [], []>} : vector<8x8xf32>, vector<8x8xf32>, vector<8x8xf32> -> vector<8x8xf32>
    %98 = vector.shape_cast %33 : vector<8x8xf32> to vector<1x8x8xf32>
    %99 = vector.shape_cast %53 : vector<8x8xf32> to vector<1x8x8xf32>
    %100 = vector.shape_cast %73 : vector<8x8xf32> to vector<1x8x8xf32>
    %101 = vector.shape_cast %93 : vector<8x8xf32> to vector<1x8x8xf32>
    %102 = tpu.concatenate %98, %99, %100, %101 in 0 : vector<1x8x8xf32>, vector<1x8x8xf32>, vector<1x8x8xf32>, vector<1x8x8xf32> -> vector<4x8x8xf32>
    %c0_50 = arith.constant 0 : index
    %c0_51 = arith.constant 0 : index
    %c0_52 = arith.constant 0 : index
    %c0_53 = arith.constant 0 : index
    %103 = vector.load %arg13[%c0_50, %c0_51, %c0_52, %c0_53] : memref<1x4x8x8xf32, #tpu.memory_space<vmem>>, vector<1x4x8x8xf32>
    %104 = vector.shape_cast %103 : vector<1x4x8x8xf32> to vector<4x8x8xf32>
    %105 = vector.shape_cast %102 : vector<4x8x8xf32> to vector<1x4x8x8xf32>
    tpu.vector_store %arg13[%c0_50, %c0_51, %c0_52, %c0_53], %105 {strides = array<i32>} : memref<1x4x8x8xf32, #tpu.memory_space<vmem>>, vector<1x4x8x8xf32>,
    %106 = tpu.concatenate %37, %57, %77, %97 in 1 : vector<8x8xf32>, vector<8x8xf32>, vector<8x8xf32>, vector<8x8xf32> -> vector<8x32xf32>
    %c0_54 = arith.constant 0 : index
    %c0_55 = arith.constant 0 : index
    %107 = vector.load %arg7[%c0_54, %c0_55] : memref<32x32xf32, #tpu.memory_space<vmem>>, vector<32x32xf32>
    %cst_56 = arith.constant dense<0.000000e+00> : vector<8x32xf32>
    %108 = tpu.matmul %106, %107, %cst_56 {dimension_numbers = #tpu.dot_dimension_numbers<[1], [0], [0], [1], [0, 0, 1, 1], [], []>} : vector<8x32xf32>, vector<32x32xf32>, vector<8x32xf32> -> vector<8x32xf32>
    %109 = arith.addf %108, %1 : vector<8x32xf32>
    %cst_57 = arith.constant dense<0.000000e+00> : vector<8xf32>
    %110 = vector.multi_reduction <add>, %109, %cst_57 [1] : vector<8x32xf32> to vector<8xf32>
    %111 = vector.shape_cast %110 : vector<8xf32> to vector<8x1xf32>
    %cst_58 = arith.constant 3.200000e+01 : f32
    %112 = vector.broadcast %cst_58 : f32 to vector<8x1xf32>
    %113 = arith.divf %111, %112 : vector<8x1xf32>
    %114 = vector.broadcast %113 : vector<8x1xf32> to vector<8x32xf32>
    %115 = arith.subf %109, %114 : vector<8x32xf32>
    %116 = arith.mulf %115, %115 : vector<8x32xf32>
    %cst_59 = arith.constant dense<0.000000e+00> : vector<8xf32>
    %117 = vector.multi_reduction <add>, %116, %cst_59 [1] : vector<8x32xf32> to vector<8xf32>
    %118 = vector.shape_cast %117 : vector<8xf32> to vector<8x1xf32>
    %cst_60 = arith.constant 3.200000e+01 : f32
    %119 = vector.broadcast %cst_60 : f32 to vector<8x1xf32>
    %120 = arith.divf %118, %119 : vector<8x1xf32>
    %cst_61 = arith.constant 9.99999997E-7 : f32
    %121 = vector.broadcast %cst_61 : f32 to vector<8x1xf32>
    %122 = arith.addf %120, %121 : vector<8x1xf32>
    %123 = math.rsqrt %122 : vector<8x1xf32>
    %124 = vector.broadcast %123 : vector<8x1xf32> to vector<8x32xf32>
    %125 = arith.mulf %115, %124 : vector<8x32xf32>
    %c0_62 = arith.constant 0 : index
    %c0_63 = arith.constant 0 : index
    %126 = vector.load %arg8[%c0_62, %c0_63] : memref<1x32xf32, #tpu.memory_space<vmem>>, vector<1x32xf32>
    %127 = vector.broadcast %126 : vector<1x32xf32> to vector<8x32xf32>
    %128 = arith.mulf %125, %127 : vector<8x32xf32>
    %c0_64 = arith.constant 0 : index
    %c0_65 = arith.constant 0 : index
    %129 = vector.load %arg9[%c0_64, %c0_65] : memref<1x32xf32, #tpu.memory_space<vmem>>, vector<1x32xf32>
    %130 = vector.broadcast %129 : vector<1x32xf32> to vector<8x32xf32>
    %131 = arith.addf %128, %130 : vector<8x32xf32>
    %c0_66 = arith.constant 0 : index
    %c0_67 = arith.constant 0 : index
    %c0_68 = arith.constant 0 : index
    %132 = vector.load %arg12[%c0_66, %c0_67, %c0_68] : memref<1x8x32xf32, #tpu.memory_space<vmem>>, vector<1x8x32xf32>
    %133 = vector.shape_cast %132 : vector<1x8x32xf32> to vector<8x32xf32>
    %134 = vector.shape_cast %131 : vector<8x32xf32> to vector<1x8x32xf32>
    tpu.vector_store %arg12[%c0_66, %c0_67, %c0_68], %134 {strides = array<i32>} : memref<1x8x32xf32, #tpu.memory_space<vmem>>, vector<1x8x32xf32>,
    return
  }
  func.func @transform_0(%arg0: i32) -> (i32, i32, i32) {
    %c0_i32 = arith.constant 0 : i32
    %c0_i32_0 = arith.constant 0 : i32
    %c0_i32_1 = arith.constant 0 : i32
    return %arg0, %c0_i32, %c0_i32_0 : i32, i32, i32
  }
  func.func @transform_1(%arg0: i32) -> (i32, i32, i32) {
    %c0_i32 = arith.constant 0 : i32
    %c0_i32_0 = arith.constant 0 : i32
    %c0_i32_1 = arith.constant 0 : i32
    return %arg0, %c0_i32, %c0_i32_0 : i32, i32, i32
  }
  func.func @transform_2(%arg0: i32) -> (i32, i32, i32) {
    %c0_i32 = arith.constant 0 : i32
    %c0_i32_0 = arith.constant 0 : i32
    %c0_i32_1 = arith.constant 0 : i32
    return %arg0, %c0_i32, %c0_i32_0 : i32, i32, i32
  }
  func.func @transform_3(%arg0: i32) -> (i32, i32) {
    %c0_i32 = arith.constant 0 : i32
    %c0_i32_0 = arith.constant 0 : i32
    %c0_i32_1 = arith.constant 0 : i32
    return %c0_i32, %c0_i32_0 : i32, i32
  }
  func.func @transform_4(%arg0: i32) -> (i32, i32) {
    %c0_i32 = arith.constant 0 : i32
    %c0_i32_0 = arith.constant 0 : i32
    %c0_i32_1 = arith.constant 0 : i32
    return %c0_i32, %c0_i32_0 : i32, i32
  }
  func.func @transform_5(%arg0: i32) -> (i32, i32) {
    %c0_i32 = arith.constant 0 : i32
    %c0_i32_0 = arith.constant 0 : i32
    %c0_i32_1 = arith.constant 0 : i32
    return %c0_i32, %c0_i32_0 : i32, i32
  }
  func.func @transform_6(%arg0: i32) -> (i32, i32) {
    %c0_i32 = arith.constant 0 : i32
    %c0_i32_0 = arith.constant 0 : i32
    %c0_i32_1 = arith.constant 0 : i32
    return %c0_i32, %c0_i32_0 : i32, i32
  }
  func.func @transform_7(%arg0: i32) -> (i32, i32) {
    %c0_i32 = arith.constant 0 : i32
    %c0_i32_0 = arith.constant 0 : i32
    %c0_i32_1 = arith.constant 0 : i32
    return %c0_i32, %c0_i32_0 : i32, i32
  }
  func.func @transform_8(%arg0: i32) -> (i32, i32) {
    %c0_i32 = arith.constant 0 : i32
    %c0_i32_0 = arith.constant 0 : i32
    %c0_i32_1 = arith.constant 0 : i32
    return %c0_i32, %c0_i32_0 : i32, i32
  }
  func.func @transform_9(%arg0: i32) -> (i32, i32, i32) {
    %c0_i32 = arith.constant 0 : i32
    %c0_i32_0 = arith.constant 0 : i32
    %c0_i32_1 = arith.constant 0 : i32
    %c0_i32_2 = arith.constant 0 : i32
    return %c0_i32, %c0_i32_0, %c0_i32_1 : i32, i32, i32
  }
  func.func @transform_10(%arg0: i32) -> (i32, i32, i32) {
    %c0_i32 = arith.constant 0 : i32
    %c0_i32_0 = arith.constant 0 : i32
    %c0_i32_1 = arith.constant 0 : i32
    return %arg0, %c0_i32, %c0_i32_0 : i32, i32, i32
  }
  func.func @transform_11(%arg0: i32) -> (i32, i32, i32) {
    %c0_i32 = arith.constant 0 : i32
    %c0_i32_0 = arith.constant 0 : i32
    %c0_i32_1 = arith.constant 0 : i32
    return %arg0, %c0_i32, %c0_i32_0 : i32, i32, i32
  }
  func.func @transform_12(%arg0: i32) -> (i32, i32, i32, i32) {
    %c0_i32 = arith.constant 0 : i32
    %c0_i32_0 = arith.constant 0 : i32
    %c0_i32_1 = arith.constant 0 : i32
    %c0_i32_2 = arith.constant 0 : i32
    return %arg0, %c0_i32, %c0_i32_0, %c0_i32_1 : i32, i32, i32, i32
  }
}

</mosaic_0001>

<llo_original>
// kernel: tpu_custom_call.1
$region0: #{tpu_custom_call.1}
  #allocation0 [shape = 'u32[]', space=smem, size = 0x4, offset = 0x4, fixed_abs, tag = 'smem constant byte address 0x4 - core index']
  #allocation1 [shape = 'u32[144,128]{1,0:T(1,128)}', space=vmem, size = 0x12000, scoped, tag = 'internal scratch']
  %s0 = inlined_call_operand.hbm [shape: f32[2,8,32], index: 0, kind: input, shape index: {}]
  %s1 = inlined_call_operand.hbm [shape: f32[2,8,32], index: 1, kind: input, shape index: {}]
  %s2 = inlined_call_operand.hbm [shape: f32[2,8,32], index: 2, kind: input, shape index: {}]
  %s3 = inlined_call_operand.hbm [shape: f32[32,32], index: 3, kind: input, shape index: {}]
  %s4 = inlined_call_operand.hbm [shape: f32[32,32], index: 4, kind: input, shape index: {}]
  %s5 = inlined_call_operand.hbm [shape: f32[32,32], index: 5, kind: input, shape index: {}]
  %s6 = inlined_call_operand.hbm [shape: f32[32,32], index: 6, kind: input, shape index: {}]
  %s7 = inlined_call_operand.vmem [shape: f32[1,32], index: 7, kind: input, shape index: {}]
  %s8 = inlined_call_operand.vmem [shape: f32[1,32], index: 8, kind: input, shape index: {}]
  %s9 = inlined_call_operand.hbm [shape: f32[4,8,8], index: 9, kind: input, shape index: {}]
  %s10 = inlined_call_operand.vmem [shape: f32[2,8,8], index: 10, kind: input, shape index: {}]
  %s11 = inlined_call_operand.hbm [shape: f32[2,8,32], index: 11, kind: output, shape index: {0}]
  %s12 = inlined_call_operand.hbm [shape: f32[2,4,8,8], index: 12, kind: output, shape index: {1}]
  %13 = xla_tuple %s11, %s12
  %s14 = sld [smem:[#allocation0]]
  $region117: #{tpu_custom_call.1} parent=0
    _
  %s16 = ssub.s32 1, %s14
  %s17 = scalar_select 0, %s16, %s14
  $region1: #{tpu_custom_call.1} parent=0
    #allocation2 [shape = 'u8[8192]{0}', space=vmem, size = 0x2000, scoped, tag = 'input window, operand 0']
    #allocation3 [shape = 's32[2]{0}', space=sflag, size = 0x8, scoped, tag = 'scoped memory for tpu_custom_call.1']
    #allocation4 [shape = 's32[2]{0}', space=sflag, size = 0x8, scoped, tag = 'scoped memory for tpu_custom_call.1']
    #allocation5 [shape = 'u8[8192]{0}', space=vmem, size = 0x2000, scoped, tag = 'input window, operand 1']
    #allocation6 [shape = 's32[2]{0}', space=sflag, size = 0x8, scoped, tag = 'scoped memory for tpu_custom_call.1']
    #allocation7 [shape = 'u8[8192]{0}', space=vmem, size = 0x2000, scoped, tag = 'input window, operand 2']
    #allocation8 [shape = 'u8[16384]{0}', space=vmem, size = 0x4000, scoped, tag = 'input window, operand 3, single buffered']
    #allocation9 [shape = 's32[1]{0}', space=sflag, size = 0x4, scoped, tag = 'scoped memory for tpu_custom_call.1']
    #allocation10 [shape = 'u8[16384]{0}', space=vmem, size = 0x4000, scoped, tag = 'input window, operand 4, single buffered']
    #allocation11 [shape = 'u8[16384]{0}', space=vmem, size = 0x4000, scoped, tag = 'input window, operand 5, single buffered']
    #allocation12 [shape = 's32[1]{0}', space=sflag, size = 0x4, scoped, tag = 'scoped memory for tpu_custom_call.1']
    #allocation13 [shape = 'u8[16384]{0}', space=vmem, size = 0x4000, scoped, tag = 'input window, operand 6, single buffered']
    #allocation14 [shape = 'u8[16384]{0}', space=vmem, size = 0x4000, scoped, tag = 'input window, operand 9, single buffered']
    #allocation15 [shape = 's32[1]{0}', space=sflag, size = 0x4, scoped, tag = 'scoped memory for tpu_custom_call.1']
    #allocation16 [shape = 'u8[8192]{0}', space=vmem, size = 0x2000, scoped, tag = 'output window, operand 0']
    #allocation17 [shape = 'u8[32768]{0}', space=vmem, size = 0x8000, scoped, tag = 'output window, operand 1']
    #allocation18 [shape = 's32[2]{0}', space=sflag, size = 0x8, scoped, tag = 'scoped memory for tpu_custom_call.1']
    %18 = vsyncpa [#allocation3], 0
    %s19 = scalar_lea.sflag [#allocation3], 1
    %20 = vsyncpa %s19, 0
    %21 = vsyncpa [#allocation6], 0
    %s22 = scalar_lea.sflag [#allocation6], 1
    %23 = vsyncpa %s22, 0
    %24 = vsyncpa [#allocation9], 0
    %25 = vsyncpa [#allocation12], 0
    %26 = vsyncpa [#allocation15], 0
    %27 = vsyncpa [#allocation4], 0
    %s28 = scalar_lea.sflag [#allocation4], 1
    %29 = vsyncpa %s28, 0
    %30 = vsyncpa [#allocation18], 0
    %s31 = scalar_lea.sflag [#allocation18], 1
    %32 = vsyncpa %s31, 0
    loop: start=0, step=1, limit=4
    $region2: #{tpu_custom_call.1} parent=1 // loop_pre_header
      _
    $region3: #{tpu_custom_call.1} parent=1 // loop_header
      %s34 = sphi 0, %s38
      %p35 = scmp.ge.s32.totalorder %s34, 4
      %s44 = sphi 0, %s46
      %s47 = sphi 0, %s44
      %s48 = sphi 0, %s47
      %s64 = sphi 0, %s48
      %s70 = sphi 0, %s72
      %s73 = sphi 0, %s70
      %s74 = sphi 0, %s73
      %s90 = sphi 0, %s74
      %s96 = sphi 0, %s98
      %s99 = sphi 0, %s96
      %s100 = sphi 0, %s99
      %s116 = sphi 0, %s100
      %s120 = sphi 0, %s120
      %s122 = sphi 0, %s120
      %s123 = sphi 0, %s122
      %s137 = sphi 0, %s123
      %s141 = sphi 0, %s141
      %s143 = sphi 0, %s141
      %s144 = sphi 0, %s143
      %s158 = sphi 0, %s144
      %s162 = sphi 0, %s162
      %s164 = sphi 0, %s162
      %s165 = sphi 0, %s164
      %s179 = sphi 0, %s165
      %s183 = sphi 0, %s183
      %s185 = sphi 0, %s183
      %s186 = sphi 0, %s185
      %s200 = sphi 0, %s186
      %s204 = sphi 0, %s204
      %s206 = sphi 0, %s204
      %s207 = sphi 0, %s206
      %s221 = sphi 0, %s207
      %s225 = sphi 0, %s225
      %s227 = sphi 0, %s225
      %s228 = sphi 0, %s227
      %s242 = sphi 0, %s228
      %s246 = sphi 0, %s246
      %s248 = sphi 0, %s246
      %s249 = sphi 0, %s248
      %s263 = sphi 0, %s249
      %s269 = sphi 0, %s271
      %s272 = sphi 0, %s269
      %s273 = sphi 0, %s272
      %s289 = sphi 0, %s273
      %s295 = sphi 0, %s297
      %s298 = sphi 0, %s295
      %s299 = sphi 0, %s298
      %s315 = sphi 0, %s299
      %s321 = sphi 0, %s323
      %s324 = sphi 0, %s321
      %s325 = sphi 0, %s324
      %s341 = sphi 0, %s325
    $region4: #{tpu_custom_call.1} parent=1 // loop_header_branch
      %37 = sbr.rel (%p35) target = $region8
    $region5: #{tpu_custom_call.1} parent=1 // loop_body
      %s39 = ssub.s32 %s34, 1
      %s40 = ssub.s32 %s34, 2
      %s41 = sadd.s32 %s34, 1
      %s42 = ssub.s32 %s34, %s41
      %p43 = scmp.eq.s32.totalorder %s42, 0
      %s45 = sadd.s32 %s44, 1
      %s46 = scalar_select %p43, %s44, %s45
      %p49 = pneg %p43
      %p50 = scmp.eq.s32.totalorder %s34, 1
      %p51 = por %p49, %p50
      %p52 = scmp.ne.s32.totalorder %s44, %s47
      %p53 = scmp.eq.s32.totalorder %s34, 0
      %p54 = por %p52, %p53
      %p55 = scmp.ne.s32.totalorder %s44, %s47
      %p56 = scmp.eq.s32.totalorder %s39, 1
      %p57 = por %p55, %p56
      %p58 = scmp.ne.s32.totalorder %s47, %s48
      %p59 = scmp.eq.s32.totalorder %s39, 0
      %p60 = por %p58, %p59
      %p61 = scmp.ne.s32.totalorder %s47, %s48
      %p62 = scmp.eq.s32.totalorder %s40, 1
      %p63 = por %p61, %p62
      %p65 = scmp.ne.s32.totalorder %s48, %s64
      %p66 = scmp.eq.s32.totalorder %s40, 0
      %p67 = por %p65, %p66
      %s68 = ssub.s32 %s34, %s41
      %p69 = scmp.eq.s32.totalorder %s68, 0
      %s71 = sadd.s32 %s70, 1
      %s72 = scalar_select %p69, %s70, %s71
      %p75 = pneg %p69
      %p76 = scmp.eq.s32.totalorder %s34, 1
      %p77 = por %p75, %p76
      %p78 = scmp.ne.s32.totalorder %s70, %s73
      %p79 = scmp.eq.s32.totalorder %s34, 0
      %p80 = por %p78, %p79
      %p81 = scmp.ne.s32.totalorder %s70, %s73
      %p82 = scmp.eq.s32.totalorder %s39, 1
      %p83 = por %p81, %p82
      %p84 = scmp.ne.s32.totalorder %s73, %s74
      %p85 = scmp.eq.s32.totalorder %s39, 0
      %p86 = por %p84, %p85
      %p87 = scmp.ne.s32.totalorder %s73, %s74
      %p88 = scmp.eq.s32.totalorder %s40, 1
      %p89 = por %p87, %p88
      %p91 = scmp.ne.s32.totalorder %s74, %s90
      %p92 = scmp.eq.s32.totalorder %s40, 0
      %p93 = por %p91, %p92
      %s94 = ssub.s32 %s34, %s41
      %p95 = scmp.eq.s32.totalorder %s94, 0
      %s97 = sadd.s32 %s96, 1
      %s98 = scalar_select %p95, %s96, %s97
      %p101 = pneg %p95
      %p102 = scmp.eq.s32.totalorder %s34, 1
      %p103 = por %p101, %p102
      %p104 = scmp.ne.s32.totalorder %s96, %s99
      %p105 = scmp.eq.s32.totalorder %s34, 0
      %p106 = por %p104, %p105
      %p107 = scmp.ne.s32.totalorder %s96, %s99
      %p108 = scmp.eq.s32.totalorder %s39, 1
      %p109 = por %p107, %p108
      %p110 = scmp.ne.s32.totalorder %s99, %s100
      %p111 = scmp.eq.s32.totalorder %s39, 0
      %p112 = por %p110, %p111
      %p113 = scmp.ne.s32.totalorder %s99, %s100
      %p114 = scmp.eq.s32.totalorder %s40, 1
      %p115 = por %p113, %p114
      %p117 = scmp.ne.s32.totalorder %s100, %s116
      %p118 = scmp.eq.s32.totalorder %s40, 0
      %p119 = por %p117, %p118
      %s121 = sadd.s32 %s120, 1
      %p124 = scmp.eq.s32.totalorder %s34, 1
      %p125 = scmp.ne.s32.totalorder %s120, %s122
      %p126 = scmp.eq.s32.totalorder %s34, 0
      %p127 = por %p125, %p126
      %p128 = scmp.ne.s32.totalorder %s120, %s122
      %p129 = scmp.eq.s32.totalorder %s39, 1
      %p130 = por %p128, %p129
      %p131 = scmp.ne.s32.totalorder %s122, %s123
      %p132 = scmp.eq.s32.totalorder %s39, 0
      %p133 = por %p131, %p132
      %p134 = scmp.ne.s32.totalorder %s122, %s123
      %p135 = scmp.eq.s32.totalorder %s40, 1
      %p136 = por %p134, %p135
      %p138 = scmp.ne.s32.totalorder %s123, %s137
      %p139 = scmp.eq.s32.totalorder %s40, 0
      %p140 = por %p138, %p139
      %s142 = sadd.s32 %s141, 1
      %p145 = scmp.eq.s32.totalorder %s34, 1
      %p146 = scmp.ne.s32.totalorder %s141, %s143
      %p147 = scmp.eq.s32.totalorder %s34, 0
      %p148 = por %p146, %p147
      %p149 = scmp.ne.s32.totalorder %s141, %s143
      %p150 = scmp.eq.s32.totalorder %s39, 1
      %p151 = por %p149, %p150
      %p152 = scmp.ne.s32.totalorder %s143, %s144
      %p153 = scmp.eq.s32.totalorder %s39, 0
      %p154 = por %p152, %p153
      %p155 = scmp.ne.s32.totalorder %s143, %s144
      %p156 = scmp.eq.s32.totalorder %s40, 1
      %p157 = por %p155, %p156
      %p159 = scmp.ne.s32.totalorder %s144, %s158
      %p160 = scmp.eq.s32.totalorder %s40, 0
      %p161 = por %p159, %p160
      %s163 = sadd.s32 %s162, 1
      %p166 = scmp.eq.s32.totalorder %s34, 1
      %p167 = scmp.ne.s32.totalorder %s162, %s164
      %p168 = scmp.eq.s32.totalorder %s34, 0
      %p169 = por %p167, %p168
      %p170 = scmp.ne.s32.totalorder %s162, %s164
      %p171 = scmp.eq.s32.totalorder %s39, 1
      %p172 = por %p170, %p171
      %p173 = scmp.ne.s32.totalorder %s164, %s165
      %p174 = scmp.eq.s32.totalorder %s39, 0
      %p175 = por %p173, %p174
      %p176 = scmp.ne.s32.totalorder %s164, %s165
      %p177 = scmp.eq.s32.totalorder %s40, 1
      %p178 = por %p176, %p177
      %p180 = scmp.ne.s32.totalorder %s165, %s179
      %p181 = scmp.eq.s32.totalorder %s40, 0
      %p182 = por %p180, %p181
      %s184 = sadd.s32 %s183, 1
      %p187 = scmp.eq.s32.totalorder %s34, 1
      %p188 = scmp.ne.s32.totalorder %s183, %s185
      %p189 = scmp.eq.s32.totalorder %s34, 0
      %p190 = por %p188, %p189
      %p191 = scmp.ne.s32.totalorder %s183, %s185
      %p192 = scmp.eq.s32.totalorder %s39, 1
      %p193 = por %p191, %p192
      %p194 = scmp.ne.s32.totalorder %s185, %s186
      %p195 = scmp.eq.s32.totalorder %s39, 0
      %p196 = por %p194, %p195
      %p197 = scmp.ne.s32.totalorder %s185, %s186
      %p198 = scmp.eq.s32.totalorder %s40, 1
      %p199 = por %p197, %p198
      %p201 = scmp.ne.s32.totalorder %s186, %s200
      %p202 = scmp.eq.s32.totalorder %s40, 0
      %p203 = por %p201, %p202
      %s205 = sadd.s32 %s204, 1
      %p208 = scmp.eq.s32.totalorder %s34, 1
      %p209 = scmp.ne.s32.totalorder %s204, %s206
      %p210 = scmp.eq.s32.totalorder %s34, 0
      %p211 = por %p209, %p210
      %p212 = scmp.ne.s32.totalorder %s204, %s206
      %p213 = scmp.eq.s32.totalorder %s39, 1
      %p214 = por %p212, %p213
      %p215 = scmp.ne.s32.totalorder %s206, %s207
      %p216 = scmp.eq.s32.totalorder %s39, 0
      %p217 = por %p215, %p216
      %p218 = scmp.ne.s32.totalorder %s206, %s207
      %p219 = scmp.eq.s32.totalorder %s40, 1
      %p220 = por %p218, %p219
      %p222 = scmp.ne.s32.totalorder %s207, %s221
      %p223 = scmp.eq.s32.totalorder %s40, 0
      %p224 = por %p222, %p223
      %s226 = sadd.s32 %s225, 1
      %p229 = scmp.eq.s32.totalorder %s34, 1
      %p230 = scmp.ne.s32.totalorder %s225, %s227
      %p231 = scmp.eq.s32.totalorder %s34, 0
      %p232 = por %p230, %p231
      %p233 = scmp.ne.s32.totalorder %s225, %s227
      %p234 = scmp.eq.s32.totalorder %s39, 1
      %p235 = por %p233, %p234
      %p236 = scmp.ne.s32.totalorder %s227, %s228
      %p237 = scmp.eq.s32.totalorder %s39, 0
      %p238 = por %p236, %p237
      %p239 = scmp.ne.s32.totalorder %s227, %s228
      %p240 = scmp.eq.s32.totalorder %s40, 1
      %p241 = por %p239, %p240
      %p243 = scmp.ne.s32.totalorder %s228, %s242
      %p244 = scmp.eq.s32.totalorder %s40, 0
      %p245 = por %p243, %p244
      %s247 = sadd.s32 %s246, 1
      %p250 = scmp.eq.s32.totalorder %s34, 1
      %p251 = scmp.ne.s32.totalorder %s246, %s248
      %p252 = scmp.eq.s32.totalorder %s34, 0
      %p253 = por %p251, %p252
      %p254 = scmp.ne.s32.totalorder %s246, %s248
      %p255 = scmp.eq.s32.totalorder %s39, 1
      %p256 = por %p254, %p255
      %p257 = scmp.ne.s32.totalorder %s248, %s249
      %p258 = scmp.eq.s32.totalorder %s39, 0
      %p259 = por %p257, %p258
      %p260 = scmp.ne.s32.totalorder %s248, %s249
      %p261 = scmp.eq.s32.totalorder %s40, 1
      %p262 = por %p260, %p261
      %p264 = scmp.ne.s32.totalorder %s249, %s263
      %p265 = scmp.eq.s32.totalorder %s40, 0
      %p266 = por %p264, %p265
      %s267 = ssub.s32 %s34, %s41
      %p268 = scmp.eq.s32.totalorder %s267, 0
      %s270 = sadd.s32 %s269, 1
      %s271 = scalar_select %p268, %s269, %s270
      %p274 = pneg %p268
      %p275 = scmp.eq.s32.totalorder %s34, 1
      %p276 = por %p274, %p275
      %p277 = scmp.ne.s32.totalorder %s269, %s272
      %p278 = scmp.eq.s32.totalorder %s34, 0
      %p279 = por %p277, %p278
      %p280 = scmp.ne.s32.totalorder %s269, %s272
      %p281 = scmp.eq.s32.totalorder %s39, 1
      %p282 = por %p280, %p281
      %p283 = scmp.ne.s32.totalorder %s272, %s273
      %p284 = scmp.eq.s32.totalorder %s39, 0
      %p285 = por %p283, %p284
      %p286 = scmp.ne.s32.totalorder %s272, %s273
      %p287 = scmp.eq.s32.totalorder %s40, 1
      %p288 = por %p286, %p287
      %p290 = scmp.ne.s32.totalorder %s273, %s289
      %p291 = scmp.eq.s32.totalorder %s40, 0
      %p292 = por %p290, %p291
      %s293 = ssub.s32 %s34, %s41
      %p294 = scmp.eq.s32.totalorder %s293, 0
      %s296 = sadd.s32 %s295, 1
      %s297 = scalar_select %p294, %s295, %s296
      %p300 = pneg %p294
      %p301 = scmp.eq.s32.totalorder %s34, 1
      %p302 = por %p300, %p301
      %p303 = scmp.ne.s32.totalorder %s295, %s298
      %p304 = scmp.eq.s32.totalorder %s34, 0
      %p305 = por %p303, %p304
      %p306 = scmp.ne.s32.totalorder %s295, %s298
      %p307 = scmp.eq.s32.totalorder %s39, 1
      %p308 = por %p306, %p307
      %p309 = scmp.ne.s32.totalorder %s298, %s299
      %p310 = scmp.eq.s32.totalorder %s39, 0
      %p311 = por %p309, %p310
      %p312 = scmp.ne.s32.totalorder %s298, %s299
      %p313 = scmp.eq.s32.totalorder %s40, 1
      %p314 = por %p312, %p313
      %p316 = scmp.ne.s32.totalorder %s299, %s315
      %p317 = scmp.eq.s32.totalorder %s40, 0
      %p318 = por %p316, %p317
      %s319 = ssub.s32 %s34, %s41
      %p320 = scmp.eq.s32.totalorder %s319, 0
      %s322 = sadd.s32 %s321, 1
      %s323 = scalar_select %p320, %s321, %s322
      %p326 = pneg %p320
      %p327 = scmp.eq.s32.totalorder %s34, 1
      %p328 = por %p326, %p327
      %p329 = scmp.ne.s32.totalorder %s321, %s324
      %p330 = scmp.eq.s32.totalorder %s34, 0
      %p331 = por %p329, %p330
      %p332 = scmp.ne.s32.totalorder %s321, %s324
      %p333 = scmp.eq.s32.totalorder %s39, 1
      %p334 = por %p332, %p333
      %p335 = scmp.ne.s32.totalorder %s324, %s325
      %p336 = scmp.eq.s32.totalorder %s39, 0
      %p337 = por %p335, %p336
      %p338 = scmp.ne.s32.totalorder %s324, %s325
      %p339 = scmp.eq.s32.totalorder %s40, 1
      %p340 = por %p338, %p339
      %p342 = scmp.ne.s32.totalorder %s325, %s341
      %p343 = scmp.eq.s32.totalorder %s40, 0
      %p344 = por %p342, %p343
      %p345 = scmp.le.s32.totalorder 1, %s34
      %p346 = scmp.lt.s32.totalorder %s34, 3
      %p347 = pnand %p345, %p346
      %p348 = pneg %p347
      // Predicated region
      $region9: #{tpu_custom_call.1} parent=5 // pred_check
        _
      $region10: #{tpu_custom_call.1} parent=5 // pred_check_branch
        %350 = sbr.rel (%p347) target = $region12
      $region11: #{tpu_custom_call.1} parent=5 // pred_region
        %s351 = ssub.s32 %s34, 1
        // Predicated region
        $region13: #{tpu_custom_call.1} parent=11 // pred_check
          %p352 = pneg %p133
        $region14: #{tpu_custom_call.1} parent=11 // pred_check_branch
          %354 = sbr.rel (%p352) target = $region16
        $region15: #{tpu_custom_call.1} parent=11 // pred_region
          %s356 = ssub.s32 512, 512
          %357 = vsyncadd [#allocation9], %s356
          %s358 = sshll.u32 [#allocation8], 4
          %s359 = int_to_ptr.vmem [resolvable:$true] %s358
          %364 = dma.hbm_to_vmem [thread:$0]  %s3, 512, %s359, [#allocation9], 128, 128, 8
        $region16: #{tpu_custom_call.1} parent=11 // pred_fallthru
          _
        // Predicated region
        $region17: #{tpu_custom_call.1} parent=11 // pred_check
          %p365 = pneg %p154
        $region18: #{tpu_custom_call.1} parent=11 // pred_check_branch
          %367 = sbr.rel (%p365) target = $region20
        $region19: #{tpu_custom_call.1} parent=11 // pred_region
          %s369 = ssub.s32 512, 512
          %370 = vsyncadd [#allocation9], %s369
          %s371 = sshll.u32 [#allocation10], 4
          %s372 = int_to_ptr.vmem [resolvable:$true] %s371
          %377 = dma.hbm_to_vmem [thread:$0]  %s4, 512, %s372, [#allocation9], 128, 128, 8
        $region20: #{tpu_custom_call.1} parent=11 // pred_fallthru
          _
        // Predicated region
        $region21: #{tpu_custom_call.1} parent=11 // pred_check
          %p378 = pneg %p175
        $region22: #{tpu_custom_call.1} parent=11 // pred_check_branch
          %380 = sbr.rel (%p378) target = $region24
        $region23: #{tpu_custom_call.1} parent=11 // pred_region
          %s382 = ssub.s32 512, 512
          %383 = vsyncadd [#allocation12], %s382
          %s384 = sshll.u32 [#allocation11], 4
          %s385 = int_to_ptr.vmem [resolvable:$true] %s384
          %390 = dma.hbm_to_vmem [thread:$0]  %s5, 512, %s385, [#allocation12], 128, 128, 8
        $region24: #{tpu_custom_call.1} parent=11 // pred_fallthru
          _
        // Predicated region
        $region25: #{tpu_custom_call.1} parent=11 // pred_check
          %p391 = pneg %p196
        $region26: #{tpu_custom_call.1} parent=11 // pred_check_branch
          %393 = sbr.rel (%p391) target = $region28
        $region27: #{tpu_custom_call.1} parent=11 // pred_region
          %s395 = ssub.s32 512, 512
          %396 = vsyncadd [#allocation12], %s395
          %s397 = sshll.u32 [#allocation13], 4
          %s398 = int_to_ptr.vmem [resolvable:$true] %s397
          %403 = dma.hbm_to_vmem [thread:$0]  %s6, 512, %s398, [#allocation12], 128, 128, 8
        $region28: #{tpu_custom_call.1} parent=11 // pred_fallthru
          _
        // Predicated region
        $region29: #{tpu_custom_call.1} parent=11 // pred_check
          %p404 = pneg %p217
        $region30: #{tpu_custom_call.1} parent=11 // pred_check_branch
          %406 = sbr.rel (%p404) target = $region32
        $region31: #{tpu_custom_call.1} parent=11 // pred_region
          _
        $region32: #{tpu_custom_call.1} parent=11 // pred_fallthru
          _
        // Predicated region
        $region33: #{tpu_custom_call.1} parent=11 // pred_check
          %p407 = pneg %p238
        $region34: #{tpu_custom_call.1} parent=11 // pred_check_branch
          %409 = sbr.rel (%p407) target = $region36
        $region35: #{tpu_custom_call.1} parent=11 // pred_region
          _
        $region36: #{tpu_custom_call.1} parent=11 // pred_fallthru
          _
        // Predicated region
        $region37: #{tpu_custom_call.1} parent=11 // pred_check
          %p410 = pneg %p259
        $region38: #{tpu_custom_call.1} parent=11 // pred_check_branch
          %412 = sbr.rel (%p410) target = $region40
        $region39: #{tpu_custom_call.1} parent=11 // pred_region
          %s414 = ssub.s32 512, 512
          %415 = vsyncadd [#allocation15], %s414
          %s416 = sshll.u32 [#allocation14], 4
          %s417 = int_to_ptr.vmem [resolvable:$true] %s416
          %422 = dma.hbm_to_vmem [thread:$0]  %s9, 512, %s417, [#allocation15], 128, 128, 8
        $region40: #{tpu_custom_call.1} parent=11 // pred_fallthru
          _
      $region12: #{tpu_custom_call.1} parent=5 // pred_fallthru
        _
      %p423 = scmp.lt.s32.totalorder %s34, 2
      // Predicated region
      $region41: #{tpu_custom_call.1} parent=5 // pred_check
        %p424 = pneg %p423
      $region42: #{tpu_custom_call.1} parent=5 // pred_check_branch
        %426 = sbr.rel (%p424) target = $region44
      $region43: #{tpu_custom_call.1} parent=5 // pred_region
        // Predicated region
        $region45: #{tpu_custom_call.1} parent=43 // pred_check
          %p427 = pneg %p54
        $region46: #{tpu_custom_call.1} parent=43 // pred_check_branch
          %429 = sbr.rel (%p427) target = $region48
        $region47: #{tpu_custom_call.1} parent=43 // pred_region
          %s430 = sand.u32 %s44, 1
          %s431 = scalar_lea.sflag [#allocation3], %s430
          %s432 = sand.u32 %s44, 1
          %s433 = smul.addr %s432, 8
          %s434 = scalar_lea.vmem [#allocation2], %s433
          %s436 = ssub.s32 128, 128
          %437 = vsyncadd %s431, %s436
          %s438 = smul.addr %s34, 128
          %s439 = scalar_lea.hbm %s0, %s438
          %s441 = sshll.u32 %s434, 4
          %s442 = int_to_ptr.vmem [resolvable:$true] %s441
          %444 = dma.hbm_to_vmem [thread:$0]  %s439, 128, %s442, %s431
        $region48: #{tpu_custom_call.1} parent=43 // pred_fallthru
          _
        // Predicated region
        $region49: #{tpu_custom_call.1} parent=43 // pred_check
          %p445 = pneg %p80
        $region50: #{tpu_custom_call.1} parent=43 // pred_check_branch
          %447 = sbr.rel (%p445) target = $region52
        $region51: #{tpu_custom_call.1} parent=43 // pred_region
          %s448 = sand.u32 %s34, 1
          %s449 = scalar_lea.sflag [#allocation6], %s448
          %s450 = sand.u32 %s70, 1
          %s451 = smul.addr %s450, 8
          %s452 = scalar_lea.vmem [#allocation5], %s451
          %s454 = ssub.s32 128, 128
          %455 = vsyncadd %s449, %s454
          %s456 = smul.addr %s34, 128
          %s457 = scalar_lea.hbm %s1, %s456
          %s459 = sshll.u32 %s452, 4
          %s460 = int_to_ptr.vmem [resolvable:$true] %s459
          %462 = dma.hbm_to_vmem [thread:$0]  %s457, 128, %s460, %s449
        $region52: #{tpu_custom_call.1} parent=43 // pred_fallthru
          _
        // Predicated region
        $region53: #{tpu_custom_call.1} parent=43 // pred_check
          %p463 = pneg %p106
        $region54: #{tpu_custom_call.1} parent=43 // pred_check_branch
          %465 = sbr.rel (%p463) target = $region56
        $region55: #{tpu_custom_call.1} parent=43 // pred_region
          %s466 = sand.u32 %s34, 1
          %s467 = scalar_lea.sflag [#allocation6], %s466
          %s468 = sand.u32 %s96, 1
          %s469 = smul.addr %s468, 8
          %s470 = scalar_lea.vmem [#allocation7], %s469
          %s472 = ssub.s32 128, 128
          %473 = vsyncadd %s467, %s472
          %s474 = smul.addr %s34, 128
          %s475 = scalar_lea.hbm %s2, %s474
          %s477 = sshll.u32 %s470, 4
          %s478 = int_to_ptr.vmem [resolvable:$true] %s477
          %480 = dma.hbm_to_vmem [thread:$0]  %s475, 128, %s478, %s467
        $region56: #{tpu_custom_call.1} parent=43 // pred_fallthru
          _
        // Predicated region
        $region57: #{tpu_custom_call.1} parent=43 // pred_check
          %p481 = pneg %p279
        $region58: #{tpu_custom_call.1} parent=43 // pred_check_branch
          %483 = sbr.rel (%p481) target = $region60
        $region59: #{tpu_custom_call.1} parent=43 // pred_region
          %p484 = scmp.lt.s32.totalorder %s34, 1
          %s485 = scalar_select %p484, %s34, 1
          %s486 = smul.addr %s485, 8
          %s487 = scalar_lea.vmem %s10, %s486
        $region60: #{tpu_custom_call.1} parent=43 // pred_fallthru
          _
      $region44: #{tpu_custom_call.1} parent=5 // pred_fallthru
        _
      %p488 = scmp.le.s32.totalorder 1, %s34
      %p489 = scmp.lt.s32.totalorder %s34, 3
      %p490 = pnand %p488, %p489
      %p491 = pneg %p490
      // Predicated region
      $region61: #{tpu_custom_call.1} parent=5 // pred_check
        _
      $region62: #{tpu_custom_call.1} parent=5 // pred_check_branch
        %493 = sbr.rel (%p490) target = $region64
      $region63: #{tpu_custom_call.1} parent=5 // pred_region
        %s494 = ssub.s32 %s34, 1
        %s495 = sand.u32 %s47, 1
        %s496 = scalar_lea.sflag [#allocation3], %s495
        %s497 = sand.u32 %s47, 1
        %s498 = smul.addr %s497, 8
        %s499 = scalar_lea.vmem [#allocation2], %s498
        // Predicated region
        $region65: #{tpu_custom_call.1} parent=63 // pred_check
          %p500 = pneg %p60
        $region66: #{tpu_custom_call.1} parent=63 // pred_check_branch
          %502 = sbr.rel (%p500) target = $region68
        $region67: #{tpu_custom_call.1} parent=63 // pred_region
          %503 = dma.done %s496, 128
        $region68: #{tpu_custom_call.1} parent=63 // pred_fallthru
          _
        %s504 = sand.u32 %s39, 1
        %s505 = scalar_lea.sflag [#allocation6], %s504
        %s506 = sand.u32 %s73, 1
        %s507 = smul.addr %s506, 8
        %s508 = scalar_lea.vmem [#allocation5], %s507
        // Predicated region
        $region69: #{tpu_custom_call.1} parent=63 // pred_check
          %p509 = pneg %p86
        $region70: #{tpu_custom_call.1} parent=63 // pred_check_branch
          %511 = sbr.rel (%p509) target = $region72
        $region71: #{tpu_custom_call.1} parent=63 // pred_region
          %512 = dma.done %s505, 128
        $region72: #{tpu_custom_call.1} parent=63 // pred_fallthru
          _
        %s513 = sand.u32 %s39, 1
        %s514 = scalar_lea.sflag [#allocation6], %s513
        %s515 = sand.u32 %s99, 1
        %s516 = smul.addr %s515, 8
        %s517 = scalar_lea.vmem [#allocation7], %s516
        // Predicated region
        $region73: #{tpu_custom_call.1} parent=63 // pred_check
          %p518 = pneg %p112
        $region74: #{tpu_custom_call.1} parent=63 // pred_check_branch
          %520 = sbr.rel (%p518) target = $region76
        $region75: #{tpu_custom_call.1} parent=63 // pred_region
          %521 = dma.done %s514, 128
        $region76: #{tpu_custom_call.1} parent=63 // pred_fallthru
          _
        // Predicated region
        $region77: #{tpu_custom_call.1} parent=63 // pred_check
          %p522 = pneg %p133
        $region78: #{tpu_custom_call.1} parent=63 // pred_check_branch
          %524 = sbr.rel (%p522) target = $region80
        $region79: #{tpu_custom_call.1} parent=63 // pred_region
          %525 = dma.done [#allocation9], 512
        $region80: #{tpu_custom_call.1} parent=63 // pred_fallthru
          _
        // Predicated region
        $region81: #{tpu_custom_call.1} parent=63 // pred_check
          %p526 = pneg %p154
        $region82: #{tpu_custom_call.1} parent=63 // pred_check_branch
          %528 = sbr.rel (%p526) target = $region84
        $region83: #{tpu_custom_call.1} parent=63 // pred_region
          %529 = dma.done [#allocation9], 512
        $region84: #{tpu_custom_call.1} parent=63 // pred_fallthru
          _
        // Predicated region
        $region85: #{tpu_custom_call.1} parent=63 // pred_check
          %p530 = pneg %p175
        $region86: #{tpu_custom_call.1} parent=63 // pred_check_branch
          %532 = sbr.rel (%p530) target = $region88
        $region87: #{tpu_custom_call.1} parent=63 // pred_region
          %533 = dma.done [#allocation12], 512
        $region88: #{tpu_custom_call.1} parent=63 // pred_fallthru
          _
        // Predicated region
        $region89: #{tpu_custom_call.1} parent=63 // pred_check
          %p534 = pneg %p196
        $region90: #{tpu_custom_call.1} parent=63 // pred_check_branch
          %536 = sbr.rel (%p534) target = $region92
        $region91: #{tpu_custom_call.1} parent=63 // pred_region
          %537 = dma.done [#allocation12], 512
        $region92: #{tpu_custom_call.1} parent=63 // pred_fallthru
          _
        // Predicated region
        $region93: #{tpu_custom_call.1} parent=63 // pred_check
          %p538 = pneg %p259
        $region94: #{tpu_custom_call.1} parent=63 // pred_check_branch
          %540 = sbr.rel (%p538) target = $region96
        $region95: #{tpu_custom_call.1} parent=63 // pred_region
          %541 = dma.done [#allocation15], 512
        $region96: #{tpu_custom_call.1} parent=63 // pred_fallthru
          _
        %s542 = sand.u32 %s47, 1
        %s543 = scalar_lea.sflag [#allocation3], %s542
        %s544 = sand.u32 %s47, 1
        %s545 = smul.addr %s544, 8
        %s546 = scalar_lea.vmem [#allocation2], %s545
        %p547 = pneg %p60
        %p548 = pneg %p57
        %s549 = sand.u32 %s39, 1
        %s550 = scalar_lea.sflag [#allocation6], %s549
        %s551 = sand.u32 %s73, 1
        %s552 = smul.addr %s551, 8
        %s553 = scalar_lea.vmem [#allocation5], %s552
        %p554 = pneg %p86
        %p555 = pneg %p83
        %s556 = sand.u32 %s39, 1
        %s557 = scalar_lea.sflag [#allocation6], %s556
        %s558 = sand.u32 %s99, 1
        %s559 = smul.addr %s558, 8
        %s560 = scalar_lea.vmem [#allocation7], %s559
        %p561 = pneg %p112
        %p562 = pneg %p109
        %p563 = pneg %p133
        %p564 = pneg %p130
        %p565 = pneg %p154
        %p566 = pneg %p151
        %p567 = pneg %p175
        %p568 = pneg %p172
        %p569 = pneg %p196
        %p570 = pneg %p193
        %p571 = pneg %p217
        %p572 = pneg %p214
        %p573 = pneg %p238
        %p574 = pneg %p235
        %p575 = pneg %p259
        %p576 = pneg %p256
        %p577 = scmp.lt.s32.totalorder %s39, 1
        %s578 = scalar_select %p577, %s39, 1
        %s579 = smul.addr %s578, 8
        %s580 = scalar_lea.vmem %s10, %s579
        %p581 = pneg %p285
        %p582 = pneg %p282
        %p583 = pneg %p311
        %p584 = pneg %p308
        %s585 = sand.u32 %s298, 1
        %s586 = scalar_lea.sflag [#allocation4], %s585
        %s587 = sand.u32 %s298, 1
        %s588 = smul.addr %s587, 8
        %s589 = scalar_lea.vmem [#allocation16], %s588
        %p590 = pneg %p337
        %p591 = pneg %p334
        %s592 = sand.u32 %s324, 1
        %s593 = scalar_lea.sflag [#allocation18], %s592
        %s594 = sand.u32 %s324, 1
        %s595 = smul.addr %s594, 32
        %s596 = scalar_lea.vmem [#allocation17], %s595
        %p597 = scmp.lt.s32.totalorder %s39, 1
        %s598 = scalar_select %p597, %s39, 1
        %s599 = smul.addr %s598, 8
        %s600 = scalar_lea.vmem %s10, %s599
        %v601 = vld [vmem:[%s499] sm:$0xff]
        %v602 = vld [vmem:[%s508] sm:$0xff]
        %v603 = vld [vmem:[%s517] sm:$0xff]
        %v604 = vld [vmem:[#allocation8] sm:$0xff]
        %v605 = vld [vmem:[#allocation8 + $0x8] sm:$0xff]
        %v606 = vld [vmem:[#allocation8 + $0x10] sm:$0xff]
        %v607 = vld [vmem:[#allocation8 + $0x18] sm:$0xff]
        %vm608 = vcmask 261120
        %v610 = vsel %vm608, %v601, 0
        %612 = vmatprep.subr.mxu0 0.0
        %613 = vmatpush1.msra.mxu0 0.0
        %614 = vmatprep.subr.mxu0 0.0
        %615 = vmatpush1.msra.mxu0 0.0
        %616 = vmatprep.subr.mxu0 0.0
        %617 = vmatpush1.msra.mxu0 0.0
        %618 = vmatprep.subr.mxu0 0.0
        %619 = vmatpush1.msra.mxu0 0.0
        %620 = vmatprep.subr.mxu0 0.0
        %621 = vmatpush1.msra.mxu0 0.0
        %622 = vmatprep.subr.mxu0 0.0
        %623 = vmatpush1.msra.mxu0 0.0
        %624 = vmatprep.subr.mxu0 0.0
        %625 = vmatpush1.msra.mxu0 0.0
        %626 = vmatprep.subr.mxu0 0.0
        %627 = vmatpush1.msra.mxu0 0.0
        %628 = vmatprep.subr.mxu0 0.0
        %629 = vmatpush1.msra.mxu0 0.0
        %630 = vmatprep.subr.mxu0 0.0
        %631 = vmatpush1.msra.mxu0 0.0
        %632 = vmatprep.subr.mxu0 0.0
        %633 = vmatpush1.msra.mxu0 0.0
        %634 = vmatprep.subr.mxu0 0.0
        %635 = vmatpush1.msra.mxu0 0.0
        %636 = vmatprep.subr.mxu0 0.0
        %637 = vmatpush1.msra.mxu0 %v607
        %638 = vmatprep.subr.mxu0 0.0
        %639 = vmatpush1.msra.mxu0 %v606
        %640 = vmatprep.subr.mxu0 0.0
        %641 = vmatpush1.msra.mxu0 %v605
        %642 = vmatprep.subr.mxu0 0.0
        %643 = vmatpush1.msra.mxu0 %v604
        %644 = vmatprep.subr.mxu0 0.0
        %645 = vmatpush2.msra.mxu0 0.0
        %646 = vmatprep.subr.mxu0 0.0
        %647 = vmatpush2.msra.mxu0 0.0
        %648 = vmatprep.subr.mxu0 0.0
        %649 = vmatpush2.msra.mxu0 0.0
        %650 = vmatprep.subr.mxu0 0.0
        %651 = vmatpush2.msra.mxu0 0.0
        %652 = vmatprep.subr.mxu0 0.0
        %653 = vmatpush2.msra.mxu0 0.0
        %654 = vmatprep.subr.mxu0 0.0
        %655 = vmatpush2.msra.mxu0 0.0
        %656 = vmatprep.subr.mxu0 0.0
        %657 = vmatpush2.msra.mxu0 0.0
        %658 = vmatprep.subr.mxu0 0.0
        %659 = vmatpush2.msra.mxu0 0.0
        %660 = vmatprep.subr.mxu0 0.0
        %661 = vmatpush2.msra.mxu0 0.0
        %662 = vmatprep.subr.mxu0 0.0
        %663 = vmatpush2.msra.mxu0 0.0
        %664 = vmatprep.subr.mxu0 0.0
        %665 = vmatpush2.msra.mxu0 0.0
        %666 = vmatprep.subr.mxu0 0.0
        %667 = vmatpush2.msra.mxu0 0.0
        %668 = vmatprep.subr.mxu0 0.0
        %669 = vmatpush2.msra.mxu0 0.0
        %670 = vmatprep.subr.mxu0 0.0
        %671 = vmatpush2.msra.mxu0 0.0
        %672 = vmatprep.subr.mxu0 0.0
        %673 = vmatpush2.msra.mxu0 0.0
        %674 = vmatprep.subr.mxu0 0.0
        %675 = vmatpush2.msra.mxu0 0.0
        %676 = vmatprep.mubr.f32.mxu0 0.0
        %677 = vmatmul.mubr.f32.gmra.mxu0 %v610
        %v678 = vpop.f32.mrf.mxu0
        %v679 = vadd.f32 0.0, %v678
        %v680 = vpop.f32.mrf.mxu0
        %681 = vdwg.mxu0
        %v682 = vmul.f32 %v679, 0.35355338
        %v683 = vld [vmem:[#allocation10] sm:$0xff]
        %v684 = vld [vmem:[#allocation10 + $0x8] sm:$0xff]
        %v685 = vld [vmem:[#allocation10 + $0x10] sm:$0xff]
        %v686 = vld [vmem:[#allocation10 + $0x18] sm:$0xff]
        %v688 = vsel %vm608, %v602, 0
        %690 = vmatprep.subr.mxu0 0.0
        %691 = vmatpush1.msra.mxu0 0.0
        %692 = vmatprep.subr.mxu0 0.0
        %693 = vmatpush1.msra.mxu0 0.0
        %694 = vmatprep.subr.mxu0 0.0
        %695 = vmatpush1.msra.mxu0 0.0
        %696 = vmatprep.subr.mxu0 0.0
        %697 = vmatpush1.msra.mxu0 0.0
        %698 = vmatprep.subr.mxu0 0.0
        %699 = vmatpush1.msra.mxu0 0.0
        %700 = vmatprep.subr.mxu0 0.0
        %701 = vmatpush1.msra.mxu0 0.0
        %702 = vmatprep.subr.mxu0 0.0
        %703 = vmatpush1.msra.mxu0 0.0
        %704 = vmatprep.subr.mxu0 0.0
        %705 = vmatpush1.msra.mxu0 0.0
        %706 = vmatprep.subr.mxu0 0.0
        %707 = vmatpush1.msra.mxu0 0.0
        %708 = vmatprep.subr.mxu0 0.0
        %709 = vmatpush1.msra.mxu0 0.0
        %710 = vmatprep.subr.mxu0 0.0
        %711 = vmatpush1.msra.mxu0 0.0
        %712 = vmatprep.subr.mxu0 0.0
        %713 = vmatpush1.msra.mxu0 0.0
        %714 = vmatprep.subr.mxu0 0.0
        %715 = vmatpush1.msra.mxu0 %v686
        %716 = vmatprep.subr.mxu0 0.0
        %717 = vmatpush1.msra.mxu0 %v685
        %718 = vmatprep.subr.mxu0 0.0
        %719 = vmatpush1.msra.mxu0 %v684
        %720 = vmatprep.subr.mxu0 0.0
        %721 = vmatpush1.msra.mxu0 %v683
        %722 = vmatprep.subr.mxu0 0.0
        %723 = vmatpush2.msra.mxu0 0.0
        %724 = vmatprep.subr.mxu0 0.0
        %725 = vmatpush2.msra.mxu0 0.0
        %726 = vmatprep.subr.mxu0 0.0
        %727 = vmatpush2.msra.mxu0 0.0
        %728 = vmatprep.subr.mxu0 0.0
        %729 = vmatpush2.msra.mxu0 0.0
        %730 = vmatprep.subr.mxu0 0.0
        %731 = vmatpush2.msra.mxu0 0.0
        %732 = vmatprep.subr.mxu0 0.0
        %733 = vmatpush2.msra.mxu0 0.0
        %734 = vmatprep.subr.mxu0 0.0
        %735 = vmatpush2.msra.mxu0 0.0
        %736 = vmatprep.subr.mxu0 0.0
        %737 = vmatpush2.msra.mxu0 0.0
        %738 = vmatprep.subr.mxu0 0.0
        %739 = vmatpush2.msra.mxu0 0.0
        %740 = vmatprep.subr.mxu0 0.0
        %741 = vmatpush2.msra.mxu0 0.0
        %742 = vmatprep.subr.mxu0 0.0
        %743 = vmatpush2.msra.mxu0 0.0
        %744 = vmatprep.subr.mxu0 0.0
        %745 = vmatpush2.msra.mxu0 0.0
        %746 = vmatprep.subr.mxu0 0.0
        %747 = vmatpush2.msra.mxu0 0.0
        %748 = vmatprep.subr.mxu0 0.0
        %749 = vmatpush2.msra.mxu0 0.0
        %750 = vmatprep.subr.mxu0 0.0
        %751 = vmatpush2.msra.mxu0 0.0
        %752 = vmatprep.subr.mxu0 0.0
        %753 = vmatpush2.msra.mxu0 0.0
        %754 = vmatprep.mubr.f32.mxu0 0.0
        %755 = vmatmul.mubr.f32.gmra.mxu0 %v688
        %v756 = vpop.f32.mrf.mxu0
        %v757 = vadd.f32 0.0, %v756
        %v758 = vpop.f32.mrf.mxu0
        %759 = vdwg.mxu0
        %v760 = vld [vmem:[#allocation11] sm:$0xff]
        %v761 = vld [vmem:[#allocation11 + $0x8] sm:$0xff]
        %v762 = vld [vmem:[#allocation11 + $0x10] sm:$0xff]
        %v763 = vld [vmem:[#allocation11 + $0x18] sm:$0xff]
        %v765 = vsel %vm608, %v603, 0
        %767 = vmatprep.subr.mxu0 0.0
        %768 = vmatpush1.msra.mxu0 0.0
        %769 = vmatprep.subr.mxu0 0.0
        %770 = vmatpush1.msra.mxu0 0.0
        %771 = vmatprep.subr.mxu0 0.0
        %772 = vmatpush1.msra.mxu0 0.0
        %773 = vmatprep.subr.mxu0 0.0
        %774 = vmatpush1.msra.mxu0 0.0
        %775 = vmatprep.subr.mxu0 0.0
        %776 = vmatpush1.msra.mxu0 0.0
        %777 = vmatprep.subr.mxu0 0.0
        %778 = vmatpush1.msra.mxu0 0.0
        %779 = vmatprep.subr.mxu0 0.0
        %780 = vmatpush1.msra.mxu0 0.0
        %781 = vmatprep.subr.mxu0 0.0
        %782 = vmatpush1.msra.mxu0 0.0
        %783 = vmatprep.subr.mxu0 0.0
        %784 = vmatpush1.msra.mxu0 0.0
        %785 = vmatprep.subr.mxu0 0.0
        %786 = vmatpush1.msra.mxu0 0.0
        %787 = vmatprep.subr.mxu0 0.0
        %788 = vmatpush1.msra.mxu0 0.0
        %789 = vmatprep.subr.mxu0 0.0
        %790 = vmatpush1.msra.mxu0 0.0
        %791 = vmatprep.subr.mxu0 0.0
        %792 = vmatpush1.msra.mxu0 %v763
        %793 = vmatprep.subr.mxu0 0.0
        %794 = vmatpush1.msra.mxu0 %v762
        %795 = vmatprep.subr.mxu0 0.0
        %796 = vmatpush1.msra.mxu0 %v761
        %797 = vmatprep.subr.mxu0 0.0
        %798 = vmatpush1.msra.mxu0 %v760
        %799 = vmatprep.subr.mxu0 0.0
        %800 = vmatpush2.msra.mxu0 0.0
        %801 = vmatprep.subr.mxu0 0.0
        %802 = vmatpush2.msra.mxu0 0.0
        %803 = vmatprep.subr.mxu0 0.0
        %804 = vmatpush2.msra.mxu0 0.0
        %805 = vmatprep.subr.mxu0 0.0
        %806 = vmatpush2.msra.mxu0 0.0
        %807 = vmatprep.subr.mxu0 0.0
        %808 = vmatpush2.msra.mxu0 0.0
        %809 = vmatprep.subr.mxu0 0.0
        %810 = vmatpush2.msra.mxu0 0.0
        %811 = vmatprep.subr.mxu0 0.0
        %812 = vmatpush2.msra.mxu0 0.0
        %813 = vmatprep.subr.mxu0 0.0
        %814 = vmatpush2.msra.mxu0 0.0
        %815 = vmatprep.subr.mxu0 0.0
        %816 = vmatpush2.msra.mxu0 0.0
        %817 = vmatprep.subr.mxu0 0.0
        %818 = vmatpush2.msra.mxu0 0.0
        %819 = vmatprep.subr.mxu0 0.0
        %820 = vmatpush2.msra.mxu0 0.0
        %821 = vmatprep.subr.mxu0 0.0
        %822 = vmatpush2.msra.mxu0 0.0
        %823 = vmatprep.subr.mxu0 0.0
        %824 = vmatpush2.msra.mxu0 0.0
        %825 = vmatprep.subr.mxu0 0.0
        %826 = vmatpush2.msra.mxu0 0.0
        %827 = vmatprep.subr.mxu0 0.0
        %828 = vmatpush2.msra.mxu0 0.0
        %829 = vmatprep.subr.mxu0 0.0
        %830 = vmatpush2.msra.mxu0 0.0
        %831 = vmatprep.mubr.f32.mxu0 0.0
        %832 = vmatmul.mubr.f32.gmra.mxu0 %v765
        %v833 = vpop.f32.mrf.mxu0
        %v834 = vadd.f32 0.0, %v833
        %v835 = vpop.f32.mrf.mxu0
        %836 = vdwg.mxu0
        %v837 = vld [vmem:[%s600] sm:$0xff]
        %vm838 = vcmp.eq.f32.partialorder %v837, 0.0
        %vm839 = vcmask 64512
        %v841 = vsel %vm839, %v682, 0
        %v844 = vsel %vm839, %v757, 0
        %846 = vmatprep.subr.mxu0 0.0
        %847 = vmatpush1.xpose.msra.mxu0 0.0
        %848 = vmatprep.subr.mxu0 0.0
        %849 = vmatpush1.xpose.msra.mxu0 0.0
        %850 = vmatprep.subr.mxu0 0.0
        %851 = vmatpush1.xpose.msra.mxu0 0.0
        %852 = vmatprep.subr.mxu0 0.0
        %853 = vmatpush1.xpose.msra.mxu0 0.0
        %854 = vmatprep.subr.mxu0 0.0
        %855 = vmatpush1.xpose.msra.mxu0 0.0
        %856 = vmatprep.subr.mxu0 0.0
        %857 = vmatpush1.xpose.msra.mxu0 0.0
        %858 = vmatprep.subr.mxu0 0.0
        %859 = vmatpush1.xpose.msra.mxu0 0.0
        %860 = vmatprep.subr.mxu0 0.0
        %861 = vmatpush1.xpose.msra.mxu0 0.0
        %862 = vmatprep.subr.mxu0 0.0
        %863 = vmatpush1.xpose.msra.mxu0 0.0
        %864 = vmatprep.subr.mxu0 0.0
        %865 = vmatpush1.xpose.msra.mxu0 0.0
        %866 = vmatprep.subr.mxu0 0.0
        %867 = vmatpush1.xpose.msra.mxu0 0.0
        %868 = vmatprep.subr.mxu0 0.0
        %869 = vmatpush1.xpose.msra.mxu0 0.0
        %870 = vmatprep.subr.mxu0 0.0
        %871 = vmatpush1.xpose.msra.mxu0 0.0
        %872 = vmatprep.subr.mxu0 0.0
        %873 = vmatpush1.xpose.msra.mxu0 0.0
        %874 = vmatprep.subr.mxu0 0.0
        %875 = vmatpush1.xpose.msra.mxu0 0.0
        %876 = vmatprep.subr.mxu0 0.0
        %877 = vmatpush1.xpose.msra.mxu0 %v844
        %878 = vmatprep.subr.mxu0 0.0
        %879 = vmatpush2.xpose.msra.mxu0 0.0
        %880 = vmatprep.subr.mxu0 0.0
        %881 = vmatpush2.xpose.msra.mxu0 0.0
        %882 = vmatprep.subr.mxu0 0.0
        %883 = vmatpush2.xpose.msra.mxu0 0.0
        %884 = vmatprep.subr.mxu0 0.0
        %885 = vmatpush2.xpose.msra.mxu0 0.0
        %886 = vmatprep.subr.mxu0 0.0
        %887 = vmatpush2.xpose.msra.mxu0 0.0
        %888 = vmatprep.subr.mxu0 0.0
        %889 = vmatpush2.xpose.msra.mxu0 0.0
        %890 = vmatprep.subr.mxu0 0.0
        %891 = vmatpush2.xpose.msra.mxu0 0.0
        %892 = vmatprep.subr.mxu0 0.0
        %893 = vmatpush2.xpose.msra.mxu0 0.0
        %894 = vmatprep.subr.mxu0 0.0
        %895 = vmatpush2.xpose.msra.mxu0 0.0
        %896 = vmatprep.subr.mxu0 0.0
        %897 = vmatpush2.xpose.msra.mxu0 0.0
        %898 = vmatprep.subr.mxu0 0.0
        %899 = vmatpush2.xpose.msra.mxu0 0.0
        %900 = vmatprep.subr.mxu0 0.0
        %901 = vmatpush2.xpose.msra.mxu0 0.0
        %902 = vmatprep.subr.mxu0 0.0
        %903 = vmatpush2.xpose.msra.mxu0 0.0
        %904 = vmatprep.subr.mxu0 0.0
        %905 = vmatpush2.xpose.msra.mxu0 0.0
        %906 = vmatprep.subr.mxu0 0.0
        %907 = vmatpush2.xpose.msra.mxu0 0.0
        %908 = vmatprep.subr.mxu0 0.0
        %909 = vmatpush2.xpose.msra.mxu0 0.0
        %910 = vmatprep.mubr.f32.mxu0 0.0
        %911 = vmatmul.mubr.f32.gmra.mxu0 %v841
        %v912 = vpop.f32.mrf.mxu0
        %v913 = vadd.f32 0.0, %v912
        %v914 = vpop.f32.mrf.mxu0
        %915 = vdwg.mxu0
        %v916 = vsel %vm838, -1e+09, %v913
        %v917 = vsel %vm839, %v916, -inf
        %918 = vmax.xlane.f32.xlu0 %v917
        %v919 = vpop.xlane.xlu0 %918
        %v920 = vsub.f32 %v916, %v919
        %v921 = vmul.f32 %v920, 1.442695
        %v922 = vpow.pop %v921
        %v923 = vsel %vm839, %v922, 0.0
        %924 = vadd.xlane.f32.xlu0 %v923
        %v925 = vpop.xlane.xlu0 %924
        %v926 = vrcp.pop %v925
        %v927 = vmul.f32 %v922, %v926
        %v928 = vld [vmem:[#allocation14] sm:$0xff]
        %v929 = vmul.f32 %v927, %v928
        %v931 = vsel %vm839, %v929, 0
        %933 = vmatprep.subr.mxu0 0.0
        %934 = vmatpush1.msra.mxu0 0.0
        %935 = vmatprep.subr.mxu0 0.0
        %936 = vmatpush1.msra.mxu0 0.0
        %937 = vmatprep.subr.mxu0 0.0
        %938 = vmatpush1.msra.mxu0 0.0
        %939 = vmatprep.subr.mxu0 0.0
        %940 = vmatpush1.msra.mxu0 0.0
        %941 = vmatprep.subr.mxu0 0.0
        %942 = vmatpush1.msra.mxu0 0.0
        %943 = vmatprep.subr.mxu0 0.0
        %944 = vmatpush1.msra.mxu0 0.0
        %945 = vmatprep.subr.mxu0 0.0
        %946 = vmatpush1.msra.mxu0 0.0
        %947 = vmatprep.subr.mxu0 0.0
        %948 = vmatpush1.msra.mxu0 0.0
        %949 = vmatprep.subr.mxu0 0.0
        %950 = vmatpush1.msra.mxu0 0.0
        %951 = vmatprep.subr.mxu0 0.0
        %952 = vmatpush1.msra.mxu0 0.0
        %953 = vmatprep.subr.mxu0 0.0
        %954 = vmatpush1.msra.mxu0 0.0
        %955 = vmatprep.subr.mxu0 0.0
        %956 = vmatpush1.msra.mxu0 0.0
        %957 = vmatprep.subr.mxu0 0.0
        %958 = vmatpush1.msra.mxu0 0.0
        %959 = vmatprep.subr.mxu0 0.0
        %960 = vmatpush1.msra.mxu0 0.0
        %961 = vmatprep.subr.mxu0 0.0
        %962 = vmatpush1.msra.mxu0 0.0
        %963 = vmatprep.subr.mxu0 0.0
        %964 = vmatpush1.msra.mxu0 %v834
        %965 = vmatprep.subr.mxu0 0.0
        %966 = vmatpush2.msra.mxu0 0.0
        %967 = vmatprep.subr.mxu0 0.0
        %968 = vmatpush2.msra.mxu0 0.0
        %969 = vmatprep.subr.mxu0 0.0
        %970 = vmatpush2.msra.mxu0 0.0
        %971 = vmatprep.subr.mxu0 0.0
        %972 = vmatpush2.msra.mxu0 0.0
        %973 = vmatprep.subr.mxu0 0.0
        %974 = vmatpush2.msra.mxu0 0.0
        %975 = vmatprep.subr.mxu0 0.0
        %976 = vmatpush2.msra.mxu0 0.0
        %977 = vmatprep.subr.mxu0 0.0
        %978 = vmatpush2.msra.mxu0 0.0
        %979 = vmatprep.subr.mxu0 0.0
        %980 = vmatpush2.msra.mxu0 0.0
        %981 = vmatprep.subr.mxu0 0.0
        %982 = vmatpush2.msra.mxu0 0.0
        %983 = vmatprep.subr.mxu0 0.0
        %984 = vmatpush2.msra.mxu0 0.0
        %985 = vmatprep.subr.mxu0 0.0
        %986 = vmatpush2.msra.mxu0 0.0
        %987 = vmatprep.subr.mxu0 0.0
        %988 = vmatpush2.msra.mxu0 0.0
        %989 = vmatprep.subr.mxu0 0.0
        %990 = vmatpush2.msra.mxu0 0.0
        %991 = vmatprep.subr.mxu0 0.0
        %992 = vmatpush2.msra.mxu0 0.0
        %993 = vmatprep.subr.mxu0 0.0
        %994 = vmatpush2.msra.mxu0 0.0
        %995 = vmatprep.subr.mxu0 0.0
        %996 = vmatpush2.msra.mxu0 0.0
        %997 = vmatprep.mubr.f32.mxu0 0.0
        %998 = vmatmul.mubr.f32.gmra.mxu0 %v931
        %v999 = vpop.f32.mrf.mxu0
        %v1000 = vadd.f32 0.0, %v999
        %v1001 = vpop.f32.mrf.mxu0
        %1002 = vdwg.mxu0
        %1003 = vrot.lane.b32.xlu0 %v682, 120
        %v1004 = vpop.permute.xlu0 %1003
        %1005 = vrot.lane.b32.xlu0 %v757, 120
        %v1006 = vpop.permute.xlu0 %1005
        %v1007 = vsel %vm839, %v1004, 0
        %v1009 = vsel %vm839, %v1006, 0
        %1011 = vmatprep.subr.mxu0 0.0
        %1012 = vmatpush1.xpose.msra.mxu0 0.0
        %1013 = vmatprep.subr.mxu0 0.0
        %1014 = vmatpush1.xpose.msra.mxu0 0.0
        %1015 = vmatprep.subr.mxu0 0.0
        %1016 = vmatpush1.xpose.msra.mxu0 0.0
        %1017 = vmatprep.subr.mxu0 0.0
        %1018 = vmatpush1.xpose.msra.mxu0 0.0
        %1019 = vmatprep.subr.mxu0 0.0
        %1020 = vmatpush1.xpose.msra.mxu0 0.0
        %1021 = vmatprep.subr.mxu0 0.0
        %1022 = vmatpush1.xpose.msra.mxu0 0.0
        %1023 = vmatprep.subr.mxu0 0.0
        %1024 = vmatpush1.xpose.msra.mxu0 0.0
        %1025 = vmatprep.subr.mxu0 0.0
        %1026 = vmatpush1.xpose.msra.mxu0 0.0
        %1027 = vmatprep.subr.mxu0 0.0
        %1028 = vmatpush1.xpose.msra.mxu0 0.0
        %1029 = vmatprep.subr.mxu0 0.0
        %1030 = vmatpush1.xpose.msra.mxu0 0.0
        %1031 = vmatprep.subr.mxu0 0.0
        %1032 = vmatpush1.xpose.msra.mxu0 0.0
        %1033 = vmatprep.subr.mxu0 0.0
        %1034 = vmatpush1.xpose.msra.mxu0 0.0
        %1035 = vmatprep.subr.mxu0 0.0
        %1036 = vmatpush1.xpose.msra.mxu0 0.0
        %1037 = vmatprep.subr.mxu0 0.0
        %1038 = vmatpush1.xpose.msra.mxu0 0.0
        %1039 = vmatprep.subr.mxu0 0.0
        %1040 = vmatpush1.xpose.msra.mxu0 0.0
        %1041 = vmatprep.subr.mxu0 0.0
        %1042 = vmatpush1.xpose.msra.mxu0 %v1009
        %1043 = vmatprep.subr.mxu0 0.0
        %1044 = vmatpush2.xpose.msra.mxu0 0.0
        %1045 = vmatprep.subr.mxu0 0.0
        %1046 = vmatpush2.xpose.msra.mxu0 0.0
        %1047 = vmatprep.subr.mxu0 0.0
        %1048 = vmatpush2.xpose.msra.mxu0 0.0
        %1049 = vmatprep.subr.mxu0 0.0
        %1050 = vmatpush2.xpose.msra.mxu0 0.0
        %1051 = vmatprep.subr.mxu0 0.0
        %1052 = vmatpush2.xpose.msra.mxu0 0.0
        %1053 = vmatprep.subr.mxu0 0.0
        %1054 = vmatpush2.xpose.msra.mxu0 0.0
        %1055 = vmatprep.subr.mxu0 0.0
        %1056 = vmatpush2.xpose.msra.mxu0 0.0
        %1057 = vmatprep.subr.mxu0 0.0
        %1058 = vmatpush2.xpose.msra.mxu0 0.0
        %1059 = vmatprep.subr.mxu0 0.0
        %1060 = vmatpush2.xpose.msra.mxu0 0.0
        %1061 = vmatprep.subr.mxu0 0.0
        %1062 = vmatpush2.xpose.msra.mxu0 0.0
        %1063 = vmatprep.subr.mxu0 0.0
        %1064 = vmatpush2.xpose.msra.mxu0 0.0
        %1065 = vmatprep.subr.mxu0 0.0
        %1066 = vmatpush2.xpose.msra.mxu0 0.0
        %1067 = vmatprep.subr.mxu0 0.0
        %1068 = vmatpush2.xpose.msra.mxu0 0.0
        %1069 = vmatprep.subr.mxu0 0.0
        %1070 = vmatpush2.xpose.msra.mxu0 0.0
        %1071 = vmatprep.subr.mxu0 0.0
        %1072 = vmatpush2.xpose.msra.mxu0 0.0
        %1073 = vmatprep.subr.mxu0 0.0
        %1074 = vmatpush2.xpose.msra.mxu0 0.0
        %1075 = vmatprep.mubr.f32.mxu0 0.0
        %1076 = vmatmul.mubr.f32.gmra.mxu0 %v1007
        %v1077 = vpop.f32.mrf.mxu0
        %v1078 = vadd.f32 0.0, %v1077
        %v1079 = vpop.f32.mrf.mxu0
        %1080 = vdwg.mxu0
        %v1081 = vsel %vm838, -1e+09, %v1078
        %v1082 = vsel %vm839, %v1081, -inf
        %1083 = vmax.xlane.f32.xlu0 %v1082
        %v1084 = vpop.xlane.xlu0 %1083
        %v1085 = vsub.f32 %v1081, %v1084
        %v1086 = vmul.f32 %v1085, 1.442695
        %v1087 = vpow.pop %v1086
        %v1088 = vsel %vm839, %v1087, 0.0
        %1089 = vadd.xlane.f32.xlu0 %v1088
        %v1090 = vpop.xlane.xlu0 %1089
        %v1091 = vrcp.pop %v1090
        %v1092 = vmul.f32 %v1087, %v1091
        %s1093 = scalar_lea.vmem [#allocation14], 8
        %v1094 = vld [vmem:[%s1093] sm:$0xff]
        %v1095 = vmul.f32 %v1092, %v1094
        %1097 = vrot.lane.b32.xlu0 %v834, 120
        %v1098 = vpop.permute.xlu0 %1097
        %v1101 = vsel %vm839, %v1095, 0
        %1103 = vmatprep.subr.mxu0 0.0
        %1104 = vmatpush1.msra.mxu0 0.0
        %1105 = vmatprep.subr.mxu0 0.0
        %1106 = vmatpush1.msra.mxu0 0.0
        %1107 = vmatprep.subr.mxu0 0.0
        %1108 = vmatpush1.msra.mxu0 0.0
        %1109 = vmatprep.subr.mxu0 0.0
        %1110 = vmatpush1.msra.mxu0 0.0
        %1111 = vmatprep.subr.mxu0 0.0
        %1112 = vmatpush1.msra.mxu0 0.0
        %1113 = vmatprep.subr.mxu0 0.0
        %1114 = vmatpush1.msra.mxu0 0.0
        %1115 = vmatprep.subr.mxu0 0.0
        %1116 = vmatpush1.msra.mxu0 0.0
        %1117 = vmatprep.subr.mxu0 0.0
        %1118 = vmatpush1.msra.mxu0 0.0
        %1119 = vmatprep.subr.mxu0 0.0
        %1120 = vmatpush1.msra.mxu0 0.0
        %1121 = vmatprep.subr.mxu0 0.0
        %1122 = vmatpush1.msra.mxu0 0.0
        %1123 = vmatprep.subr.mxu0 0.0
        %1124 = vmatpush1.msra.mxu0 0.0
        %1125 = vmatprep.subr.mxu0 0.0
        %1126 = vmatpush1.msra.mxu0 0.0
        %1127 = vmatprep.subr.mxu0 0.0
        %1128 = vmatpush1.msra.mxu0 0.0
        %1129 = vmatprep.subr.mxu0 0.0
        %1130 = vmatpush1.msra.mxu0 0.0
        %1131 = vmatprep.subr.mxu0 0.0
        %1132 = vmatpush1.msra.mxu0 0.0
        %1133 = vmatprep.subr.mxu0 0.0
        %1134 = vmatpush1.msra.mxu0 %v1098
        %1135 = vmatprep.subr.mxu0 0.0
        %1136 = vmatpush2.msra.mxu0 0.0
        %1137 = vmatprep.subr.mxu0 0.0
        %1138 = vmatpush2.msra.mxu0 0.0
        %1139 = vmatprep.subr.mxu0 0.0
        %1140 = vmatpush2.msra.mxu0 0.0
        %1141 = vmatprep.subr.mxu0 0.0
        %1142 = vmatpush2.msra.mxu0 0.0
        %1143 = vmatprep.subr.mxu0 0.0
        %1144 = vmatpush2.msra.mxu0 0.0
        %1145 = vmatprep.subr.mxu0 0.0
        %1146 = vmatpush2.msra.mxu0 0.0
        %1147 = vmatprep.subr.mxu0 0.0
        %1148 = vmatpush2.msra.mxu0 0.0
        %1149 = vmatprep.subr.mxu0 0.0
        %1150 = vmatpush2.msra.mxu0 0.0
        %1151 = vmatprep.subr.mxu0 0.0
        %1152 = vmatpush2.msra.mxu0 0.0
        %1153 = vmatprep.subr.mxu0 0.0
        %1154 = vmatpush2.msra.mxu0 0.0
        %1155 = vmatprep.subr.mxu0 0.0
        %1156 = vmatpush2.msra.mxu0 0.0
        %1157 = vmatprep.subr.mxu0 0.0
        %1158 = vmatpush2.msra.mxu0 0.0
        %1159 = vmatprep.subr.mxu0 0.0
        %1160 = vmatpush2.msra.mxu0 0.0
        %1161 = vmatprep.subr.mxu0 0.0
        %1162 = vmatpush2.msra.mxu0 0.0
        %1163 = vmatprep.subr.mxu0 0.0
        %1164 = vmatpush2.msra.mxu0 0.0
        %1165 = vmatprep.subr.mxu0 0.0
        %1166 = vmatpush2.msra.mxu0 0.0
        %1167 = vmatprep.mubr.f32.mxu0 0.0
        %1168 = vmatmul.mubr.f32.gmra.mxu0 %v1101
        %v1169 = vpop.f32.mrf.mxu0
        %v1170 = vadd.f32 0.0, %v1169
        %v1171 = vpop.f32.mrf.mxu0
        %1172 = vdwg.mxu0
        %1173 = vrot.lane.b32.xlu0 %v682, 112
        %v1174 = vpop.permute.xlu0 %1173
        %1175 = vrot.lane.b32.xlu0 %v757, 112
        %v1176 = vpop.permute.xlu0 %1175
        %v1177 = vsel %vm839, %v1174, 0
        %v1179 = vsel %vm839, %v1176, 0
        %1181 = vmatprep.subr.mxu0 0.0
        %1182 = vmatpush1.xpose.msra.mxu0 0.0
        %1183 = vmatprep.subr.mxu0 0.0
        %1184 = vmatpush1.xpose.msra.mxu0 0.0
        %1185 = vmatprep.subr.mxu0 0.0
        %1186 = vmatpush1.xpose.msra.mxu0 0.0
        %1187 = vmatprep.subr.mxu0 0.0
        %1188 = vmatpush1.xpose.msra.mxu0 0.0
        %1189 = vmatprep.subr.mxu0 0.0
        %1190 = vmatpush1.xpose.msra.mxu0 0.0
        %1191 = vmatprep.subr.mxu0 0.0
        %1192 = vmatpush1.xpose.msra.mxu0 0.0
        %1193 = vmatprep.subr.mxu0 0.0
        %1194 = vmatpush1.xpose.msra.mxu0 0.0
        %1195 = vmatprep.subr.mxu0 0.0
        %1196 = vmatpush1.xpose.msra.mxu0 0.0
        %1197 = vmatprep.subr.mxu0 0.0
        %1198 = vmatpush1.xpose.msra.mxu0 0.0
        %1199 = vmatprep.subr.mxu0 0.0
        %1200 = vmatpush1.xpose.msra.mxu0 0.0
        %1201 = vmatprep.subr.mxu0 0.0
        %1202 = vmatpush1.xpose.msra.mxu0 0.0
        %1203 = vmatprep.subr.mxu0 0.0
        %1204 = vmatpush1.xpose.msra.mxu0 0.0
        %1205 = vmatprep.subr.mxu0 0.0
        %1206 = vmatpush1.xpose.msra.mxu0 0.0
        %1207 = vmatprep.subr.mxu0 0.0
        %1208 = vmatpush1.xpose.msra.mxu0 0.0
        %1209 = vmatprep.subr.mxu0 0.0
        %1210 = vmatpush1.xpose.msra.mxu0 0.0
        %1211 = vmatprep.subr.mxu0 0.0
        %1212 = vmatpush1.xpose.msra.mxu0 %v1179
        %1213 = vmatprep.subr.mxu0 0.0
        %1214 = vmatpush2.xpose.msra.mxu0 0.0
        %1215 = vmatprep.subr.mxu0 0.0
        %1216 = vmatpush2.xpose.msra.mxu0 0.0
        %1217 = vmatprep.subr.mxu0 0.0
        %1218 = vmatpush2.xpose.msra.mxu0 0.0
        %1219 = vmatprep.subr.mxu0 0.0
        %1220 = vmatpush2.xpose.msra.mxu0 0.0
        %1221 = vmatprep.subr.mxu0 0.0
        %1222 = vmatpush2.xpose.msra.mxu0 0.0
        %1223 = vmatprep.subr.mxu0 0.0
        %1224 = vmatpush2.xpose.msra.mxu0 0.0
        %1225 = vmatprep.subr.mxu0 0.0
        %1226 = vmatpush2.xpose.msra.mxu0 0.0
        %1227 = vmatprep.subr.mxu0 0.0
        %1228 = vmatpush2.xpose.msra.mxu0 0.0
        %1229 = vmatprep.subr.mxu0 0.0
        %1230 = vmatpush2.xpose.msra.mxu0 0.0
        %1231 = vmatprep.subr.mxu0 0.0
        %1232 = vmatpush2.xpose.msra.mxu0 0.0
        %1233 = vmatprep.subr.mxu0 0.0
        %1234 = vmatpush2.xpose.msra.mxu0 0.0
        %1235 = vmatprep.subr.mxu0 0.0
        %1236 = vmatpush2.xpose.msra.mxu0 0.0
        %1237 = vmatprep.subr.mxu0 0.0
        %1238 = vmatpush2.xpose.msra.mxu0 0.0
        %1239 = vmatprep.subr.mxu0 0.0
        %1240 = vmatpush2.xpose.msra.mxu0 0.0
        %1241 = vmatprep.subr.mxu0 0.0
        %1242 = vmatpush2.xpose.msra.mxu0 0.0
        %1243 = vmatprep.subr.mxu0 0.0
        %1244 = vmatpush2.xpose.msra.mxu0 0.0
        %1245 = vmatprep.mubr.f32.mxu0 0.0
        %1246 = vmatmul.mubr.f32.gmra.mxu0 %v1177
        %v1247 = vpop.f32.mrf.mxu0
        %v1248 = vadd.f32 0.0, %v1247
        %v1249 = vpop.f32.mrf.mxu0
        %1250 = vdwg.mxu0
        %v1251 = vsel %vm838, -1e+09, %v1248
        %v1252 = vsel %vm839, %v1251, -inf
        %1253 = vmax.xlane.f32.xlu0 %v1252
        %v1254 = vpop.xlane.xlu0 %1253
        %v1255 = vsub.f32 %v1251, %v1254
        %v1256 = vmul.f32 %v1255, 1.442695
        %v1257 = vpow.pop %v1256
        %v1258 = vsel %vm839, %v1257, 0.0
        %1259 = vadd.xlane.f32.xlu0 %v1258
        %v1260 = vpop.xlane.xlu0 %1259
        %v1261 = vrcp.pop %v1260
        %v1262 = vmul.f32 %v1257, %v1261
        %s1263 = scalar_lea.vmem [#allocation14], 16
        %v1264 = vld [vmem:[%s1263] sm:$0xff]
        %v1265 = vmul.f32 %v1262, %v1264
        %1266 = vrot.lane.b32.xlu0 %v834, 112
        %v1267 = vpop.permute.xlu0 %1266
        %v1270 = vsel %vm839, %v1265, 0
        %1272 = vmatprep.subr.mxu0 0.0
        %1273 = vmatpush1.msra.mxu0 0.0
        %1274 = vmatprep.subr.mxu0 0.0
        %1275 = vmatpush1.msra.mxu0 0.0
        %1276 = vmatprep.subr.mxu0 0.0
        %1277 = vmatpush1.msra.mxu0 0.0
        %1278 = vmatprep.subr.mxu0 0.0
        %1279 = vmatpush1.msra.mxu0 0.0
        %1280 = vmatprep.subr.mxu0 0.0
        %1281 = vmatpush1.msra.mxu0 0.0
        %1282 = vmatprep.subr.mxu0 0.0
        %1283 = vmatpush1.msra.mxu0 0.0
        %1284 = vmatprep.subr.mxu0 0.0
        %1285 = vmatpush1.msra.mxu0 0.0
        %1286 = vmatprep.subr.mxu0 0.0
        %1287 = vmatpush1.msra.mxu0 0.0
        %1288 = vmatprep.subr.mxu0 0.0
        %1289 = vmatpush1.msra.mxu0 0.0
        %1290 = vmatprep.subr.mxu0 0.0
        %1291 = vmatpush1.msra.mxu0 0.0
        %1292 = vmatprep.subr.mxu0 0.0
        %1293 = vmatpush1.msra.mxu0 0.0
        %1294 = vmatprep.subr.mxu0 0.0
        %1295 = vmatpush1.msra.mxu0 0.0
        %1296 = vmatprep.subr.mxu0 0.0
        %1297 = vmatpush1.msra.mxu0 0.0
        %1298 = vmatprep.subr.mxu0 0.0
        %1299 = vmatpush1.msra.mxu0 0.0
        %1300 = vmatprep.subr.mxu0 0.0
        %1301 = vmatpush1.msra.mxu0 0.0
        %1302 = vmatprep.subr.mxu0 0.0
        %1303 = vmatpush1.msra.mxu0 %v1267
        %1304 = vmatprep.subr.mxu0 0.0
        %1305 = vmatpush2.msra.mxu0 0.0
        %1306 = vmatprep.subr.mxu0 0.0
        %1307 = vmatpush2.msra.mxu0 0.0
        %1308 = vmatprep.subr.mxu0 0.0
        %1309 = vmatpush2.msra.mxu0 0.0
        %1310 = vmatprep.subr.mxu0 0.0
        %1311 = vmatpush2.msra.mxu0 0.0
        %1312 = vmatprep.subr.mxu0 0.0
        %1313 = vmatpush2.msra.mxu0 0.0
        %1314 = vmatprep.subr.mxu0 0.0
        %1315 = vmatpush2.msra.mxu0 0.0
        %1316 = vmatprep.subr.mxu0 0.0
        %1317 = vmatpush2.msra.mxu0 0.0
        %1318 = vmatprep.subr.mxu0 0.0
        %1319 = vmatpush2.msra.mxu0 0.0
        %1320 = vmatprep.subr.mxu0 0.0
        %1321 = vmatpush2.msra.mxu0 0.0
        %1322 = vmatprep.subr.mxu0 0.0
        %1323 = vmatpush2.msra.mxu0 0.0
        %1324 = vmatprep.subr.mxu0 0.0
        %1325 = vmatpush2.msra.mxu0 0.0
        %1326 = vmatprep.subr.mxu0 0.0
        %1327 = vmatpush2.msra.mxu0 0.0
        %1328 = vmatprep.subr.mxu0 0.0
        %1329 = vmatpush2.msra.mxu0 0.0
        %1330 = vmatprep.subr.mxu0 0.0
        %1331 = vmatpush2.msra.mxu0 0.0
        %1332 = vmatprep.subr.mxu0 0.0
        %1333 = vmatpush2.msra.mxu0 0.0
        %1334 = vmatprep.subr.mxu0 0.0
        %1335 = vmatpush2.msra.mxu0 0.0
        %1336 = vmatprep.mubr.f32.mxu0 0.0
        %1337 = vmatmul.mubr.f32.gmra.mxu0 %v1270
        %v1338 = vpop.f32.mrf.mxu0
        %v1339 = vadd.f32 0.0, %v1338
        %v1340 = vpop.f32.mrf.mxu0
        %1341 = vdwg.mxu0
        %1342 = vrot.lane.b32.xlu0 %v682, 104
        %v1343 = vpop.permute.xlu0 %1342
        %1344 = vrot.lane.b32.xlu0 %v757, 104
        %v1345 = vpop.permute.xlu0 %1344
        %v1346 = vsel %vm839, %v1343, 0
        %v1348 = vsel %vm839, %v1345, 0
        %1350 = vmatprep.subr.mxu0 0.0
        %1351 = vmatpush1.xpose.msra.mxu0 0.0
        %1352 = vmatprep.subr.mxu0 0.0
        %1353 = vmatpush1.xpose.msra.mxu0 0.0
        %1354 = vmatprep.subr.mxu0 0.0
        %1355 = vmatpush1.xpose.msra.mxu0 0.0
        %1356 = vmatprep.subr.mxu0 0.0
        %1357 = vmatpush1.xpose.msra.mxu0 0.0
        %1358 = vmatprep.subr.mxu0 0.0
        %1359 = vmatpush1.xpose.msra.mxu0 0.0
        %1360 = vmatprep.subr.mxu0 0.0
        %1361 = vmatpush1.xpose.msra.mxu0 0.0
        %1362 = vmatprep.subr.mxu0 0.0
        %1363 = vmatpush1.xpose.msra.mxu0 0.0
        %1364 = vmatprep.subr.mxu0 0.0
        %1365 = vmatpush1.xpose.msra.mxu0 0.0
        %1366 = vmatprep.subr.mxu0 0.0
        %1367 = vmatpush1.xpose.msra.mxu0 0.0
        %1368 = vmatprep.subr.mxu0 0.0
        %1369 = vmatpush1.xpose.msra.mxu0 0.0
        %1370 = vmatprep.subr.mxu0 0.0
        %1371 = vmatpush1.xpose.msra.mxu0 0.0
        %1372 = vmatprep.subr.mxu0 0.0
        %1373 = vmatpush1.xpose.msra.mxu0 0.0
        %1374 = vmatprep.subr.mxu0 0.0
        %1375 = vmatpush1.xpose.msra.mxu0 0.0
        %1376 = vmatprep.subr.mxu0 0.0
        %1377 = vmatpush1.xpose.msra.mxu0 0.0
        %1378 = vmatprep.subr.mxu0 0.0
        %1379 = vmatpush1.xpose.msra.mxu0 0.0
        %1380 = vmatprep.subr.mxu0 0.0
        %1381 = vmatpush1.xpose.msra.mxu0 %v1348
        %1382 = vmatprep.subr.mxu0 0.0
        %1383 = vmatpush2.xpose.msra.mxu0 0.0
        %1384 = vmatprep.subr.mxu0 0.0
        %1385 = vmatpush2.xpose.msra.mxu0 0.0
        %1386 = vmatprep.subr.mxu0 0.0
        %1387 = vmatpush2.xpose.msra.mxu0 0.0
        %1388 = vmatprep.subr.mxu0 0.0
        %1389 = vmatpush2.xpose.msra.mxu0 0.0
        %1390 = vmatprep.subr.mxu0 0.0
        %1391 = vmatpush2.xpose.msra.mxu0 0.0
        %1392 = vmatprep.subr.mxu0 0.0
        %1393 = vmatpush2.xpose.msra.mxu0 0.0
        %1394 = vmatprep.subr.mxu0 0.0
        %1395 = vmatpush2.xpose.msra.mxu0 0.0
        %1396 = vmatprep.subr.mxu0 0.0
        %1397 = vmatpush2.xpose.msra.mxu0 0.0
        %1398 = vmatprep.subr.mxu0 0.0
        %1399 = vmatpush2.xpose.msra.mxu0 0.0
        %1400 = vmatprep.subr.mxu0 0.0
        %1401 = vmatpush2.xpose.msra.mxu0 0.0
        %1402 = vmatprep.subr.mxu0 0.0
        %1403 = vmatpush2.xpose.msra.mxu0 0.0
        %1404 = vmatprep.subr.mxu0 0.0
        %1405 = vmatpush2.xpose.msra.mxu0 0.0
        %1406 = vmatprep.subr.mxu0 0.0
        %1407 = vmatpush2.xpose.msra.mxu0 0.0
        %1408 = vmatprep.subr.mxu0 0.0
        %1409 = vmatpush2.xpose.msra.mxu0 0.0
        %1410 = vmatprep.subr.mxu0 0.0
        %1411 = vmatpush2.xpose.msra.mxu0 0.0
        %1412 = vmatprep.subr.mxu0 0.0
        %1413 = vmatpush2.xpose.msra.mxu0 0.0
        %1414 = vmatprep.mubr.f32.mxu0 0.0
        %1415 = vmatmul.mubr.f32.gmra.mxu0 %v1346
        %v1416 = vpop.f32.mrf.mxu0
        %v1417 = vadd.f32 0.0, %v1416
        %v1418 = vpop.f32.mrf.mxu0
        %1419 = vdwg.mxu0
        %v1420 = vsel %vm838, -1e+09, %v1417
        %v1421 = vsel %vm839, %v1420, -inf
        %1422 = vmax.xlane.f32.xlu0 %v1421
        %v1423 = vpop.xlane.xlu0 %1422
        %v1424 = vsub.f32 %v1420, %v1423
        %v1425 = vmul.f32 %v1424, 1.442695
        %v1426 = vpow.pop %v1425
        %v1427 = vsel %vm839, %v1426, 0.0
        %1428 = vadd.xlane.f32.xlu0 %v1427
        %v1429 = vpop.xlane.xlu0 %1428
        %v1430 = vrcp.pop %v1429
        %v1431 = vmul.f32 %v1426, %v1430
        %s1432 = scalar_lea.vmem [#allocation14], 24
        %v1433 = vld [vmem:[%s1432] sm:$0xff]
        %v1434 = vmul.f32 %v1431, %v1433
        %1435 = vrot.lane.b32.xlu0 %v834, 104
        %v1436 = vpop.permute.xlu0 %1435
        %v1439 = vsel %vm839, %v1434, 0
        %1441 = vmatprep.subr.mxu0 0.0
        %1442 = vmatpush1.msra.mxu0 0.0
        %1443 = vmatprep.subr.mxu0 0.0
        %1444 = vmatpush1.msra.mxu0 0.0
        %1445 = vmatprep.subr.mxu0 0.0
        %1446 = vmatpush1.msra.mxu0 0.0
        %1447 = vmatprep.subr.mxu0 0.0
        %1448 = vmatpush1.msra.mxu0 0.0
        %1449 = vmatprep.subr.mxu0 0.0
        %1450 = vmatpush1.msra.mxu0 0.0
        %1451 = vmatprep.subr.mxu0 0.0
        %1452 = vmatpush1.msra.mxu0 0.0
        %1453 = vmatprep.subr.mxu0 0.0
        %1454 = vmatpush1.msra.mxu0 0.0
        %1455 = vmatprep.subr.mxu0 0.0
        %1456 = vmatpush1.msra.mxu0 0.0
        %1457 = vmatprep.subr.mxu0 0.0
        %1458 = vmatpush1.msra.mxu0 0.0
        %1459 = vmatprep.subr.mxu0 0.0
        %1460 = vmatpush1.msra.mxu0 0.0
        %1461 = vmatprep.subr.mxu0 0.0
        %1462 = vmatpush1.msra.mxu0 0.0
        %1463 = vmatprep.subr.mxu0 0.0
        %1464 = vmatpush1.msra.mxu0 0.0
        %1465 = vmatprep.subr.mxu0 0.0
        %1466 = vmatpush1.msra.mxu0 0.0
        %1467 = vmatprep.subr.mxu0 0.0
        %1468 = vmatpush1.msra.mxu0 0.0
        %1469 = vmatprep.subr.mxu0 0.0
        %1470 = vmatpush1.msra.mxu0 0.0
        %1471 = vmatprep.subr.mxu0 0.0
        %1472 = vmatpush1.msra.mxu0 %v1436
        %1473 = vmatprep.subr.mxu0 0.0
        %1474 = vmatpush2.msra.mxu0 0.0
        %1475 = vmatprep.subr.mxu0 0.0
        %1476 = vmatpush2.msra.mxu0 0.0
        %1477 = vmatprep.subr.mxu0 0.0
        %1478 = vmatpush2.msra.mxu0 0.0
        %1479 = vmatprep.subr.mxu0 0.0
        %1480 = vmatpush2.msra.mxu0 0.0
        %1481 = vmatprep.subr.mxu0 0.0
        %1482 = vmatpush2.msra.mxu0 0.0
        %1483 = vmatprep.subr.mxu0 0.0
        %1484 = vmatpush2.msra.mxu0 0.0
        %1485 = vmatprep.subr.mxu0 0.0
        %1486 = vmatpush2.msra.mxu0 0.0
        %1487 = vmatprep.subr.mxu0 0.0
        %1488 = vmatpush2.msra.mxu0 0.0
        %1489 = vmatprep.subr.mxu0 0.0
        %1490 = vmatpush2.msra.mxu0 0.0
        %1491 = vmatprep.subr.mxu0 0.0
        %1492 = vmatpush2.msra.mxu0 0.0
        %1493 = vmatprep.subr.mxu0 0.0
        %1494 = vmatpush2.msra.mxu0 0.0
        %1495 = vmatprep.subr.mxu0 0.0
        %1496 = vmatpush2.msra.mxu0 0.0
        %1497 = vmatprep.subr.mxu0 0.0
        %1498 = vmatpush2.msra.mxu0 0.0
        %1499 = vmatprep.subr.mxu0 0.0
        %1500 = vmatpush2.msra.mxu0 0.0
        %1501 = vmatprep.subr.mxu0 0.0
        %1502 = vmatpush2.msra.mxu0 0.0
        %1503 = vmatprep.subr.mxu0 0.0
        %1504 = vmatpush2.msra.mxu0 0.0
        %1505 = vmatprep.mubr.f32.mxu0 0.0
        %1506 = vmatmul.mubr.f32.gmra.mxu0 %v1439
        %v1507 = vpop.f32.mrf.mxu0
        %v1508 = vadd.f32 0.0, %v1507
        %v1509 = vpop.f32.mrf.mxu0
        %1510 = vdwg.mxu0
        %1511 = vst.msk [vmem:[%s596] sm:$0xff] %vm839, %v927
        %1512 = vst.msk [vmem:[%s596 + $0x8] sm:$0xff] %vm839, %v1092
        %1513 = vst.msk [vmem:[%s596 + $0x10] sm:$0xff] %vm839, %v1262
        %1514 = vst.msk [vmem:[%s596 + $0x18] sm:$0xff] %vm839, %v1431
        %1516 = vrot.lane.b32.xlu0 %v1170, 8
        %v1517 = vpop.permute.xlu0 %1516
        %1520 = vrot.lane.b32.xlu0 %v1339, 16
        %v1521 = vpop.permute.xlu0 %1520
        %1524 = vrot.lane.b32.xlu0 %v1508, 24
        %v1525 = vpop.permute.xlu0 %1524
        %v1527 = vsel %vm839, %v1000, %v1517
        %vm1528 = vcmask 130048
        %v1529 = vsel %vm1528, %v1527, %v1521
        %vm1530 = vcmask 195584
        %v1531 = vsel %vm1530, %v1529, %v1525
        %v1532 = vld [vmem:[#allocation13] sm:$0xff]
        %v1533 = vld [vmem:[#allocation13 + $0x8] sm:$0xff]
        %v1534 = vld [vmem:[#allocation13 + $0x10] sm:$0xff]
        %v1535 = vld [vmem:[#allocation13 + $0x18] sm:$0xff]
        %v1537 = vsel %vm608, %v1531, 0
        %1539 = vmatprep.subr.mxu0 0.0
        %1540 = vmatpush1.msra.mxu0 0.0
        %1541 = vmatprep.subr.mxu0 0.0
        %1542 = vmatpush1.msra.mxu0 0.0
        %1543 = vmatprep.subr.mxu0 0.0
        %1544 = vmatpush1.msra.mxu0 0.0
        %1545 = vmatprep.subr.mxu0 0.0
        %1546 = vmatpush1.msra.mxu0 0.0
        %1547 = vmatprep.subr.mxu0 0.0
        %1548 = vmatpush1.msra.mxu0 0.0
        %1549 = vmatprep.subr.mxu0 0.0
        %1550 = vmatpush1.msra.mxu0 0.0
        %1551 = vmatprep.subr.mxu0 0.0
        %1552 = vmatpush1.msra.mxu0 0.0
        %1553 = vmatprep.subr.mxu0 0.0
        %1554 = vmatpush1.msra.mxu0 0.0
        %1555 = vmatprep.subr.mxu0 0.0
        %1556 = vmatpush1.msra.mxu0 0.0
        %1557 = vmatprep.subr.mxu0 0.0
        %1558 = vmatpush1.msra.mxu0 0.0
        %1559 = vmatprep.subr.mxu0 0.0
        %1560 = vmatpush1.msra.mxu0 0.0
        %1561 = vmatprep.subr.mxu0 0.0
        %1562 = vmatpush1.msra.mxu0 0.0
        %1563 = vmatprep.subr.mxu0 0.0
        %1564 = vmatpush1.msra.mxu0 %v1535
        %1565 = vmatprep.subr.mxu0 0.0
        %1566 = vmatpush1.msra.mxu0 %v1534
        %1567 = vmatprep.subr.mxu0 0.0
        %1568 = vmatpush1.msra.mxu0 %v1533
        %1569 = vmatprep.subr.mxu0 0.0
        %1570 = vmatpush1.msra.mxu0 %v1532
        %1571 = vmatprep.subr.mxu0 0.0
        %1572 = vmatpush2.msra.mxu0 0.0
        %1573 = vmatprep.subr.mxu0 0.0
        %1574 = vmatpush2.msra.mxu0 0.0
        %1575 = vmatprep.subr.mxu0 0.0
        %1576 = vmatpush2.msra.mxu0 0.0
        %1577 = vmatprep.subr.mxu0 0.0
        %1578 = vmatpush2.msra.mxu0 0.0
        %1579 = vmatprep.subr.mxu0 0.0
        %1580 = vmatpush2.msra.mxu0 0.0
        %1581 = vmatprep.subr.mxu0 0.0
        %1582 = vmatpush2.msra.mxu0 0.0
        %1583 = vmatprep.subr.mxu0 0.0
        %1584 = vmatpush2.msra.mxu0 0.0
        %1585 = vmatprep.subr.mxu0 0.0
        %1586 = vmatpush2.msra.mxu0 0.0
        %1587 = vmatprep.subr.mxu0 0.0
        %1588 = vmatpush2.msra.mxu0 0.0
        %1589 = vmatprep.subr.mxu0 0.0
        %1590 = vmatpush2.msra.mxu0 0.0
        %1591 = vmatprep.subr.mxu0 0.0
        %1592 = vmatpush2.msra.mxu0 0.0
        %1593 = vmatprep.subr.mxu0 0.0
        %1594 = vmatpush2.msra.mxu0 0.0
        %1595 = vmatprep.subr.mxu0 0.0
        %1596 = vmatpush2.msra.mxu0 0.0
        %1597 = vmatprep.subr.mxu0 0.0
        %1598 = vmatpush2.msra.mxu0 0.0
        %1599 = vmatprep.subr.mxu0 0.0
        %1600 = vmatpush2.msra.mxu0 0.0
        %1601 = vmatprep.subr.mxu0 0.0
        %1602 = vmatpush2.msra.mxu0 0.0
        %1603 = vmatprep.mubr.f32.mxu0 0.0
        %1604 = vmatmul.mubr.f32.gmra.mxu0 %v1537
        %v1605 = vpop.f32.mrf.mxu0
        %v1606 = vadd.f32 %v601, %v1605
        %v1607 = vpop.f32.mrf.mxu0
        %1608 = vdwg.mxu0
        %v1609 = vsel %vm608, %v1606, 0.0
        %1610 = vadd.xlane.f32.xlu0 %v1609
        %v1611 = vpop.xlane.xlu0 %1610
        %v1612 = vrcp.pop 32.0
        %v1613 = vmul.f32 %v1611, %v1612
        %v1614 = vsub.f32 %v1606, %v1613
        %v1615 = vmul.f32 %v1614, %v1614
        %v1616 = vsel %vm608, %v1615, 0.0
        %1617 = vadd.xlane.f32.xlu0 %v1616
        %v1618 = vpop.xlane.xlu0 %1617
        %v1619 = vmul.f32 %v1618, %v1612
        %v1620 = vadd.f32 %v1619, 1e-06
        %v1621 = vrsqrt.pop %v1620
        %v1622 = vmul.f32 %v1614, %v1621
        %v1623 = vld [vmem:[%s7] sm:$0x1]
        %v1625 = vlaneseq
        %v1626 = vshrl.u32 %v1625, 7
        %v1627 = vsub.s32 0, %v1626
        %v1628 = vrot.slane %v1623, %v1627
        %v1630 = vmul.f32 %v1622, %v1628
        %v1631 = vld [vmem:[%s8] sm:$0x1]
        %v1633 = vlaneseq
        %v1634 = vshrl.u32 %v1633, 7
        %v1635 = vsub.s32 0, %v1634
        %v1636 = vrot.slane %v1631, %v1635
        %v1638 = vadd.f32 %v1630, %v1636
        %1639 = vst.msk [vmem:[%s589] sm:$0xff] %vm608, %v1638
        %s1640 = sand.u32 %s298, 1
        %s1641 = scalar_lea.sflag [#allocation4], %s1640
        %s1642 = sand.u32 %s298, 1
        %s1643 = smul.addr %s1642, 8
        %s1644 = scalar_lea.vmem [#allocation16], %s1643
        %s1645 = sand.u32 %s324, 1
        %s1646 = scalar_lea.sflag [#allocation18], %s1645
        %s1647 = sand.u32 %s324, 1
        %s1648 = smul.addr %s1647, 32
        %s1649 = scalar_lea.vmem [#allocation17], %s1648
        // Predicated region
        $region97: #{tpu_custom_call.1} parent=63 // pred_check
          %p1650 = pneg %p308
        $region98: #{tpu_custom_call.1} parent=63 // pred_check_branch
          %1652 = sbr.rel (%p1650) target = $region100
        $region99: #{tpu_custom_call.1} parent=63 // pred_region
          %s1654 = ssub.s32 128, 128
          %1655 = vsyncadd %s1641, %s1654
          %s1656 = smul.addr %s39, 128
          %s1657 = scalar_lea.hbm %s11, %s1656
          %s1659 = sshll.u32 %s1644, 4
          %s1660 = int_to_ptr.vmem [resolvable:$true] %s1659
          %1662 = dma.vmem_to_hbm [thread:$0]  %s1660, 128, %s1657, %s1641
        $region100: #{tpu_custom_call.1} parent=63 // pred_fallthru
          _
        // Predicated region
        $region101: #{tpu_custom_call.1} parent=63 // pred_check
          %p1663 = pneg %p334
        $region102: #{tpu_custom_call.1} parent=63 // pred_check_branch
          %1665 = sbr.rel (%p1663) target = $region104
        $region103: #{tpu_custom_call.1} parent=63 // pred_region
          %s1667 = ssub.s32 512, 512
          %1668 = vsyncadd %s1646, %s1667
          %s1669 = smul.addr %s39, 4
          %s1670 = smul.addr %s1669, 128
          %s1671 = scalar_lea.hbm %s12, %s1670
          %s1672 = sshll.u32 %s1649, 4
          %s1673 = int_to_ptr.vmem [resolvable:$true] %s1672
          %1678 = dma.vmem_to_hbm [thread:$0]  %s1673, 512, %s1671, %s1646, 128, 128, 8
        $region104: #{tpu_custom_call.1} parent=63 // pred_fallthru
          _
      $region64: #{tpu_custom_call.1} parent=5 // pred_fallthru
        _
      %p1679 = scmp.le.s32.totalorder 2, %s34
      // Predicated region
      $region105: #{tpu_custom_call.1} parent=5 // pred_check
        %p1680 = pneg %p1679
      $region106: #{tpu_custom_call.1} parent=5 // pred_check_branch
        %1682 = sbr.rel (%p1680) target = $region108
      $region107: #{tpu_custom_call.1} parent=5 // pred_region
        %s1683 = ssub.s32 %s34, 2
        // Predicated region
        $region109: #{tpu_custom_call.1} parent=107 // pred_check
          %p1684 = pneg %p314
        $region110: #{tpu_custom_call.1} parent=107 // pred_check_branch
          %1686 = sbr.rel (%p1684) target = $region112
        $region111: #{tpu_custom_call.1} parent=107 // pred_region
          %s1687 = sand.u32 %s299, 1
          %s1688 = scalar_lea.sflag [#allocation4], %s1687
          %s1689 = sand.u32 %s299, 1
          %s1690 = smul.addr %s1689, 8
          %s1691 = scalar_lea.vmem [#allocation16], %s1690
          %1692 = dma.done %s1688, 128
        $region112: #{tpu_custom_call.1} parent=107 // pred_fallthru
          _
        // Predicated region
        $region113: #{tpu_custom_call.1} parent=107 // pred_check
          %p1693 = pneg %p340
        $region114: #{tpu_custom_call.1} parent=107 // pred_check_branch
          %1695 = sbr.rel (%p1693) target = $region116
        $region115: #{tpu_custom_call.1} parent=107 // pred_region
          %s1696 = sand.u32 %s325, 1
          %s1697 = scalar_lea.sflag [#allocation18], %s1696
          %s1698 = sand.u32 %s325, 1
          %s1699 = smul.addr %s1698, 32
          %s1700 = scalar_lea.vmem [#allocation17], %s1699
          %1701 = dma.done %s1697, 512
        $region116: #{tpu_custom_call.1} parent=107 // pred_fallthru
          _
      $region108: #{tpu_custom_call.1} parent=5 // pred_fallthru
        _
    $region6: #{tpu_custom_call.1} parent=1 // loop_footer
      %s38 = sadd.s32 1, %s34
    $region7: #{tpu_custom_call.1} parent=1 // loop_footer_branch
      %33 = sbr.rel target = $region3
    $region8: #{tpu_custom_call.1} parent=1 // loop_exit
      _
    %1702 = vsyncpa [#allocation3], 1
    %s1703 = scalar_lea.sflag [#allocation3], 1
    %1704 = vsyncpa %s1703, 1
    %1705 = vsyncpa [#allocation6], 1
    %s1706 = scalar_lea.sflag [#allocation6], 1
    %1707 = vsyncpa %s1706, 1
    %1708 = vsyncpa [#allocation9], 1
    %1709 = vsyncpa [#allocation12], 1
    %1710 = vsyncpa [#allocation15], 1
    %1711 = vsyncpa [#allocation4], 1
    %s1712 = scalar_lea.sflag [#allocation4], 1
    %1713 = vsyncpa %s1712, 1
    %1714 = vsyncpa [#allocation18], 1
    %s1715 = scalar_lea.sflag [#allocation18], 1
    %1716 = vsyncpa %s1715, 1

</llo_original>
